<compile_context>
chip_gen: v6e
topology: v6e:2x2x1
jax: 0.10.0
libtpu: 0.0.40
codegen_flags: <defaults>
</compile_context>

<pallas_src>
import functools

import jax
import jax.numpy as jnp
from jax.experimental import pallas as pl
from jax.experimental.pallas import tpu as pltpu


# ---------------------------------------------------------------------------
# Pallas kernel 1: conv-as-matmul, lane-dense output.
#   o = relu(W @ P + b)   W:(Cout,K)  P:(K,M)  b:(Cout,1)  o:(Cout,M)
# ---------------------------------------------------------------------------
def _conv_kernel(w_ref, p_ref, b_ref, o_ref):
    acc = jnp.dot(w_ref[...], p_ref[...], preferred_element_type=jnp.float32)
    acc = acc + b_ref[...]                        # broadcast over lanes (M)
    o_ref[...] = jnp.maximum(acc, 0.0).astype(o_ref.dtype)


def conv_matmul(w_mat, patches, b_col):
    Cout, K = w_mat.shape
    K2, M = patches.shape
    assert K == K2
    return pl.pallas_call(
        _conv_kernel,
        out_shape=jax.ShapeDtypeStruct((Cout, M), jnp.float32),
        grid_spec=pl.GridSpec(
            grid=(1,),
            in_specs=[
                pl.BlockSpec((Cout, K), lambda i: (0, 0)),
                pl.BlockSpec((K, M), lambda i: (0, 0)),
                pl.BlockSpec((Cout, 1), lambda i: (0, 0)),
            ],
            out_specs=pl.BlockSpec((Cout, M), lambda i: (0, 0)),
        ),
        compiler_params=pltpu.CompilerParams(
            dimension_semantics=("arbitrary",)),
    )(w_mat, patches, b_col)


# ---------------------------------------------------------------------------
# Pallas kernel 2: fused FC stack for BOTH Q heads.
#   h  = relu(F @ W1 + b1)          F:(B,lin_in)  W1:(lin_in,400)
#   q  = h @ Wh + bh                Wh:(400,128) block-diag (fc2 | fc4), padded
# The 128-wide head keeps the final store unmasked (v5e store-slot friendly);
# the two real columns are sliced in the wrapper.
# ---------------------------------------------------------------------------
def _fc_fused_kernel(f_ref, w1_ref, b1_ref, wh_ref, bh_ref, o_ref):
    h = jnp.dot(f_ref[...], w1_ref[...], preferred_element_type=jnp.float32)
    h = jnp.maximum(h + b1_ref[...], 0.0)                      # (B, 400)
    q = jnp.dot(h, wh_ref[...], preferred_element_type=jnp.float32)
    o_ref[...] = (q + bh_ref[...]).astype(o_ref.dtype)         # (B, 128)


def fc_heads(features, w1, b1, wh, bh):
    B, K = features.shape
    _, H2 = w1.shape
    _, NP = wh.shape
    return pl.pallas_call(
        _fc_fused_kernel,
        out_shape=jax.ShapeDtypeStruct((B, NP), jnp.float32),
        grid_spec=pl.GridSpec(
            grid=(1,),
            in_specs=[
                pl.BlockSpec((B, K), lambda i: (0, 0)),
                pl.BlockSpec((K, H2), lambda i: (0, 0)),
                pl.BlockSpec((1, H2), lambda i: (0, 0)),
                pl.BlockSpec((H2, NP), lambda i: (0, 0)),
                pl.BlockSpec((1, NP), lambda i: (0, 0)),
            ],
            out_specs=pl.BlockSpec((B, NP), lambda i: (0, 0)),
        ),
        compiler_params=pltpu.CompilerParams(
            dimension_semantics=("arbitrary",)),
    )(features, w1, b1, wh, bh)


# ---------------------------------------------------------------------------
# im2col glue (plain JAX), channel-first layout, NO transposes.
#   x:(C, B, H, W) -> patches (KH*KW*C, B*OH*OW), row order (kh, kw, c)
# ---------------------------------------------------------------------------
def _im2col_cf(x, kh, kw, stride):
    C, B, H, W = x.shape
    OH = (H - kh) // stride + 1
    OW = (W - kw) // stride + 1
    cols = []
    for i in range(kh):
        for j in range(kw):
            cols.append(x[:, :, i:i + stride * OH:stride,
                             j:j + stride * OW:stride])
    p = jnp.stack(cols, axis=0)                       # (KH*KW, C, B, OH, OW)
    p = p.reshape(kh * kw * C, B * OH * OW)
    return p, OH, OW


# ---------------------------------------------------------------------------
# Deterministic parameter init (same shapes as the PyTorch __init__).
# ---------------------------------------------------------------------------
def _uniform(key, shape, fan_in):
    bound = 1.0 / jnp.sqrt(jnp.float32(fan_in))
    return jax.random.uniform(key, shape, jnp.float32, -bound, bound)


def conv2d_size_out(size, kernel_size=5, stride=2):
    return (size - (kernel_size - 1) - 1) // stride + 1


def init_params(key, action_dim, width=40, height=40):
    cw = conv2d_size_out(conv2d_size_out(conv2d_size_out(width)))
    ch = conv2d_size_out(conv2d_size_out(conv2d_size_out(height)))
    lin_in = cw * ch * 32 + action_dim
    k = jax.random.split(key, 14)
    return {
        "conv1_w": _uniform(k[0], (32, 3, 5, 5), 3 * 25),
        "conv1_b": _uniform(k[1], (32,), 3 * 25),
        "conv2_w": _uniform(k[2], (32, 32, 5, 5), 32 * 25),
        "conv2_b": _uniform(k[3], (32,), 32 * 25),
        "conv3_w": _uniform(k[4], (32, 32, 5, 5), 32 * 25),
        "conv3_b": _uniform(k[5], (32,), 32 * 25),
        "fc1_w": _uniform(k[6], (200, lin_in), lin_in),
        "fc1_b": _uniform(k[7], (200,), lin_in),
        "fc2_w": _uniform(k[8], (1, 200), 200),
        "fc2_b": _uniform(k[9], (1,), 200),
        "fc3_w": _uniform(k[10], (200, lin_in), lin_in),
        "fc3_b": _uniform(k[11], (200,), lin_in),
        "fc4_w": _uniform(k[12], (1, 200), 200),
        "fc4_b": _uniform(k[13], (1,), 200),
        # conv4/conv5/conv6 exist in the PyTorch __init__ but are never used
        # by forward(), so they are omitted here.
    }


_HEAD_PAD = 128  # padded lane width of the fc2/fc4 head output


def prepare_params(p):
    """One-time conversion to kernel-ready layouts (no per-forward transposes)."""
    def conv_prep(w, b):
        Cout, Cin, KH, KW = w.shape
        # column order (kh, kw, cin) to match _im2col_cf row order
        w_mat = jnp.transpose(w, (0, 2, 3, 1)).reshape(
            Cout, KH * KW * Cin).astype(jnp.float32)
        return w_mat, b.reshape(Cout, 1).astype(jnp.float32)

    kp = {}
    kp["c1_w"], kp["c1_b"] = conv_prep(p["conv1_w"], p["conv1_b"])
    kp["c2_w"], kp["c2_b"] = conv_prep(p["conv2_w"], p["conv2_b"])
    kp["c3_w"], kp["c3_b"] = conv_prep(p["conv3_w"], p["conv3_b"])

    # merged fc1/fc3: (lin_in, 400); both heads consume the same features
    kp["w1"] = jnp.concatenate(
        [p["fc1_w"].T, p["fc3_w"].T], axis=1).astype(jnp.float32)
    kp["b1"] = jnp.concatenate(
        [p["fc1_b"], p["fc3_b"]]).reshape(1, -1).astype(jnp.float32)

    # block-diagonal fc2/fc4 head padded to 128 lanes (unmasked store)
    wh = jnp.zeros((400, _HEAD_PAD), jnp.float32)
    wh = wh.at[:200, 0].set(p["fc2_w"][0].astype(jnp.float32))
    wh = wh.at[200:, 1].set(p["fc4_w"][0].astype(jnp.float32))
    bh = jnp.zeros((1, _HEAD_PAD), jnp.float32)
    bh = bh.at[0, 0].set(p["fc2_b"][0].astype(jnp.float32))
    bh = bh.at[0, 1].set(p["fc4_b"][0].astype(jnp.float32))
    kp["wh"], kp["bh"] = wh, bh
    return kp


# ---------------------------------------------------------------------------
# Forward pass (Critic.forward)
# ---------------------------------------------------------------------------
def critic_forward(kp, x, action):
    B = x.shape[0]
    # channel-first activations: (Cin, B, H, W); one tiny transpose of x only
    h = jnp.transpose(x.astype(jnp.float32), (1, 0, 2, 3))

    # --- shared conv trunk (computed once, reused by both Q heads) ---
    # TODO(synk): the original PyTorch forward() feeds the (B,1) fc2 output
    # into conv2/conv3 for the q2 branch, which is non-executable in PyTorch;
    # implemented here as the evident intent: one conv1->conv2->conv3 chain on
    # x shared by both heads.
    for wk, bk in (("c1_w", "c1_b"), ("c2_w", "c2_b"), ("c3_w", "c3_b")):
        patches, OH, OW = _im2col_cf(h, 5, 5, 2)
        out = conv_matmul(kp[wk], patches, kp[bk])     # (Cout, B*OH*OW)
        h = out.reshape(out.shape[0], B, OH, OW)       # stay channel-first

    # NCHW flatten order (matches PyTorch .view(B, -1)); tensor is tiny here
    feat = jnp.transpose(h, (1, 0, 2, 3)).reshape(B, -1)
    feat = jnp.concatenate([feat, action.astype(jnp.float32)], axis=1)

    # --- both Q heads in one fused pallas_call ---
    # TODO(synk): on v7x the two heads could be split across the 2 TensorCores
    # via a 'parallel' grid axis; at this size a single fused call is faster.
    q = fc_heads(feat, kp["w1"], kp["b1"], kp["wh"], kp["bh"])  # (B, 128)
    return q[:, 0:1], q[:, 1:2]


if __name__ == "__main__":
    key = jax.random.PRNGKey(0)
    k_p, k_x, k_a = jax.random.split(key, 3)

    batch, action_dim, width, height = 2, 4, 40, 40
    params = init_params(k_p, action_dim, width, height)
    kparams = prepare_params(params)          # one-time kernel-ready layouts

    x = jax.random.normal(k_x, (batch, 3, height, width), jnp.float32)  # NCHW
    action = jax.random.normal(k_a, (batch, action_dim), jnp.float32)

    fwd = jax.jit(critic_forward)
    q1, q2 = fwd(kparams, x, action)
    jax.block_until_ready((q1, q2))

    assert q1.shape == (batch, 1) and q2.shape == (batch, 1)
    print("KERNEL_OK")
</pallas_src>

<mosaic_0001>
module attributes {stable_mosaic.version = 11 : i64} {
  func.func @_conv_kernel(%arg0: i32, %arg1: memref<32x75xf32, #tpu.memory_space<vmem>>, %arg2: memref<75x648xf32, #tpu.memory_space<vmem>>, %arg3: memref<32x1xf32, #tpu.memory_space<vmem>>, %arg4: memref<32x648xf32, #tpu.memory_space<vmem>>) attributes {dimension_semantics = [#tpu.dimension_semantics<arbitrary>], iteration_bounds = array<i64: 1>, scalar_prefetch = 0 : i64, scratch_operands = 0 : i64, tpu.core_type = #tpu.core_type<tc>, window_params = [{pipeline_mode = #tpu.pipeline_mode<synchronous>, transform_indices = @transform_0, window_bounds = array<i64: 32, 75>}, {pipeline_mode = #tpu.pipeline_mode<synchronous>, transform_indices = @transform_1, window_bounds = array<i64: 75, 648>}, {pipeline_mode = #tpu.pipeline_mode<synchronous>, transform_indices = @transform_2, window_bounds = array<i64: 32, 1>}, {pipeline_mode = #tpu.pipeline_mode<synchronous>, transform_indices = @transform_3, window_bounds = array<i64: 32, 648>}]} {
    %c0 = arith.constant 0 : index
    %c0_0 = arith.constant 0 : index
    %0 = vector.load %arg1[%c0, %c0_0] : memref<32x75xf32, #tpu.memory_space<vmem>>, vector<32x75xf32>
    %c0_1 = arith.constant 0 : index
    %c0_2 = arith.constant 0 : index
    %1 = vector.load %arg2[%c0_1, %c0_2] : memref<75x648xf32, #tpu.memory_space<vmem>>, vector<75x648xf32>
    %cst = arith.constant dense<0.000000e+00> : vector<32x648xf32>
    %2 = tpu.matmul %0, %1, %cst {dimension_numbers = #tpu.dot_dimension_numbers<[1], [0], [0], [1], [0, 0, 1, 1], [], []>} : vector<32x75xf32>, vector<75x648xf32>, vector<32x648xf32> -> vector<32x648xf32>
    %c0_3 = arith.constant 0 : index
    %c0_4 = arith.constant 0 : index
    %3 = vector.load %arg3[%c0_3, %c0_4] : memref<32x1xf32, #tpu.memory_space<vmem>>, vector<32x1xf32>
    %4 = vector.broadcast %3 : vector<32x1xf32> to vector<32x648xf32>
    %5 = arith.addf %2, %4 : vector<32x648xf32>
    %cst_5 = arith.constant 0.000000e+00 : f32
    %6 = vector.broadcast %cst_5 : f32 to vector<32x648xf32>
    %7 = arith.maximumf %5, %6 : vector<32x648xf32>
    %c0_6 = arith.constant 0 : index
    %c0_7 = arith.constant 0 : index
    %8 = vector.load %arg4[%c0_6, %c0_7] : memref<32x648xf32, #tpu.memory_space<vmem>>, vector<32x648xf32>
    tpu.vector_store %arg4[%c0_6, %c0_7], %7 {strides = array<i32>} : memref<32x648xf32, #tpu.memory_space<vmem>>, vector<32x648xf32>,
    return
  }
  func.func @transform_0(%arg0: i32) -> (i32, i32) {
    %c0_i32 = arith.constant 0 : i32
    %c0_i32_0 = arith.constant 0 : i32
    %c0_i32_1 = arith.constant 0 : i32
    return %c0_i32, %c0_i32_0 : i32, i32
  }
  func.func @transform_1(%arg0: i32) -> (i32, i32) {
    %c0_i32 = arith.constant 0 : i32
    %c0_i32_0 = arith.constant 0 : i32
    %c0_i32_1 = arith.constant 0 : i32
    return %c0_i32, %c0_i32_0 : i32, i32
  }
  func.func @transform_2(%arg0: i32) -> (i32, i32) {
    %c0_i32 = arith.constant 0 : i32
    %c0_i32_0 = arith.constant 0 : i32
    %c0_i32_1 = arith.constant 0 : i32
    return %c0_i32, %c0_i32_0 : i32, i32
  }
  func.func @transform_3(%arg0: i32) -> (i32, i32) {
    %c0_i32 = arith.constant 0 : i32
    %c0_i32_0 = arith.constant 0 : i32
    %c0_i32_1 = arith.constant 0 : i32
    return %c0_i32, %c0_i32_0 : i32, i32
  }
}

module attributes {stable_mosaic.version = 11 : i64} {
  func.func @_conv_kernel(%arg0: i32, %arg1: memref<32x800xf32, #tpu.memory_space<vmem>>, %arg2: memref<800x98xf32, #tpu.memory_space<vmem>>, %arg3: memref<32x1xf32, #tpu.memory_space<vmem>>, %arg4: memref<32x98xf32, #tpu.memory_space<vmem>>) attributes {dimension_semantics = [#tpu.dimension_semantics<arbitrary>], iteration_bounds = array<i64: 1>, scalar_prefetch = 0 : i64, scratch_operands = 0 : i64, tpu.core_type = #tpu.core_type<tc>, window_params = [{pipeline_mode = #tpu.pipeline_mode<synchronous>, transform_indices = @transform_0, window_bounds = array<i64: 32, 800>}, {pipeline_mode = #tpu.pipeline_mode<synchronous>, transform_indices = @transform_1, window_bounds = array<i64: 800, 98>}, {pipeline_mode = #tpu.pipeline_mode<synchronous>, transform_indices = @transform_2, window_bounds = array<i64: 32, 1>}, {pipeline_mode = #tpu.pipeline_mode<synchronous>, transform_indices = @transform_3, window_bounds = array<i64: 32, 98>}]} {
    %c0 = arith.constant 0 : index
    %c0_0 = arith.constant 0 : index
    %0 = vector.load %arg1[%c0, %c0_0] : memref<32x800xf32, #tpu.memory_space<vmem>>, vector<32x800xf32>
    %c0_1 = arith.constant 0 : index
    %c0_2 = arith.constant 0 : index
    %1 = vector.load %arg2[%c0_1, %c0_2] : memref<800x98xf32, #tpu.memory_space<vmem>>, vector<800x98xf32>
    %cst = arith.constant dense<0.000000e+00> : vector<32x98xf32>
    %2 = tpu.matmul %0, %1, %cst {dimension_numbers = #tpu.dot_dimension_numbers<[1], [0], [0], [1], [0, 0, 1, 1], [], []>} : vector<32x800xf32>, vector<800x98xf32>, vector<32x98xf32> -> vector<32x98xf32>
    %c0_3 = arith.constant 0 : index
    %c0_4 = arith.constant 0 : index
    %3 = vector.load %arg3[%c0_3, %c0_4] : memref<32x1xf32, #tpu.memory_space<vmem>>, vector<32x1xf32>
    %4 = vector.broadcast %3 : vector<32x1xf32> to vector<32x98xf32>
    %5 = arith.addf %2, %4 : vector<32x98xf32>
    %cst_5 = arith.constant 0.000000e+00 : f32
    %6 = vector.broadcast %cst_5 : f32 to vector<32x98xf32>
    %7 = arith.maximumf %5, %6 : vector<32x98xf32>
    %c0_6 = arith.constant 0 : index
    %c0_7 = arith.constant 0 : index
    %8 = vector.load %arg4[%c0_6, %c0_7] : memref<32x98xf32, #tpu.memory_space<vmem>>, vector<32x98xf32>
    tpu.vector_store %arg4[%c0_6, %c0_7], %7 {strides = array<i32>} : memref<32x98xf32, #tpu.memory_space<vmem>>, vector<32x98xf32>,
    return
  }
  func.func @transform_0(%arg0: i32) -> (i32, i32) {
    %c0_i32 = arith.constant 0 : i32
    %c0_i32_0 = arith.constant 0 : i32
    %c0_i32_1 = arith.constant 0 : i32
    return %c0_i32, %c0_i32_0 : i32, i32
  }
  func.func @transform_1(%arg0: i32) -> (i32, i32) {
    %c0_i32 = arith.constant 0 : i32
    %c0_i32_0 = arith.constant 0 : i32
    %c0_i32_1 = arith.constant 0 : i32
    return %c0_i32, %c0_i32_0 : i32, i32
  }
  func.func @transform_2(%arg0: i32) -> (i32, i32) {
    %c0_i32 = arith.constant 0 : i32
    %c0_i32_0 = arith.constant 0 : i32
    %c0_i32_1 = arith.constant 0 : i32
    return %c0_i32, %c0_i32_0 : i32, i32
  }
  func.func @transform_3(%arg0: i32) -> (i32, i32) {
    %c0_i32 = arith.constant 0 : i32
    %c0_i32_0 = arith.constant 0 : i32
    %c0_i32_1 = arith.constant 0 : i32
    return %c0_i32, %c0_i32_0 : i32, i32
  }
}

module attributes {stable_mosaic.version = 11 : i64} {
  func.func @_conv_kernel(%arg0: i32, %arg1: memref<32x800xf32, #tpu.memory_space<vmem>>, %arg2: memref<800x8xf32, #tpu.memory_space<vmem>>, %arg3: memref<32x1xf32, #tpu.memory_space<vmem>>, %arg4: memref<32x8xf32, #tpu.memory_space<vmem>>) attributes {dimension_semantics = [#tpu.dimension_semantics<arbitrary>], iteration_bounds = array<i64: 1>, scalar_prefetch = 0 : i64, scratch_operands = 0 : i64, tpu.core_type = #tpu.core_type<tc>, window_params = [{pipeline_mode = #tpu.pipeline_mode<synchronous>, transform_indices = @transform_0, window_bounds = array<i64: 32, 800>}, {pipeline_mode = #tpu.pipeline_mode<synchronous>, transform_indices = @transform_1, window_bounds = array<i64: 800, 8>}, {pipeline_mode = #tpu.pipeline_mode<synchronous>, transform_indices = @transform_2, window_bounds = array<i64: 32, 1>}, {pipeline_mode = #tpu.pipeline_mode<synchronous>, transform_indices = @transform_3, window_bounds = array<i64: 32, 8>}]} {
    %c0 = arith.constant 0 : index
    %c0_0 = arith.constant 0 : index
    %0 = vector.load %arg1[%c0, %c0_0] : memref<32x800xf32, #tpu.memory_space<vmem>>, vector<32x800xf32>
    %c0_1 = arith.constant 0 : index
    %c0_2 = arith.constant 0 : index
    %1 = vector.load %arg2[%c0_1, %c0_2] : memref<800x8xf32, #tpu.memory_space<vmem>>, vector<800x8xf32>
    %cst = arith.constant dense<0.000000e+00> : vector<32x8xf32>
    %2 = tpu.matmul %0, %1, %cst {dimension_numbers = #tpu.dot_dimension_numbers<[1], [0], [0], [1], [0, 0, 1, 1], [], []>} : vector<32x800xf32>, vector<800x8xf32>, vector<32x8xf32> -> vector<32x8xf32>
    %c0_3 = arith.constant 0 : index
    %c0_4 = arith.constant 0 : index
    %3 = vector.load %arg3[%c0_3, %c0_4] : memref<32x1xf32, #tpu.memory_space<vmem>>, vector<32x1xf32>
    %4 = vector.broadcast %3 : vector<32x1xf32> to vector<32x8xf32>
    %5 = arith.addf %2, %4 : vector<32x8xf32>
    %cst_5 = arith.constant 0.000000e+00 : f32
    %6 = vector.broadcast %cst_5 : f32 to vector<32x8xf32>
    %7 = arith.maximumf %5, %6 : vector<32x8xf32>
    %c0_6 = arith.constant 0 : index
    %c0_7 = arith.constant 0 : index
    %8 = vector.load %arg4[%c0_6, %c0_7] : memref<32x8xf32, #tpu.memory_space<vmem>>, vector<32x8xf32>
    tpu.vector_store %arg4[%c0_6, %c0_7], %7 {strides = array<i32>} : memref<32x8xf32, #tpu.memory_space<vmem>>, vector<32x8xf32>,
    return
  }
  func.func @transform_0(%arg0: i32) -> (i32, i32) {
    %c0_i32 = arith.constant 0 : i32
    %c0_i32_0 = arith.constant 0 : i32
    %c0_i32_1 = arith.constant 0 : i32
    return %c0_i32, %c0_i32_0 : i32, i32
  }
  func.func @transform_1(%arg0: i32) -> (i32, i32) {
    %c0_i32 = arith.constant 0 : i32
    %c0_i32_0 = arith.constant 0 : i32
    %c0_i32_1 = arith.constant 0 : i32
    return %c0_i32, %c0_i32_0 : i32, i32
  }
  func.func @transform_2(%arg0: i32) -> (i32, i32) {
    %c0_i32 = arith.constant 0 : i32
    %c0_i32_0 = arith.constant 0 : i32
    %c0_i32_1 = arith.constant 0 : i32
    return %c0_i32, %c0_i32_0 : i32, i32
  }
  func.func @transform_3(%arg0: i32) -> (i32, i32) {
    %c0_i32 = arith.constant 0 : i32
    %c0_i32_0 = arith.constant 0 : i32
    %c0_i32_1 = arith.constant 0 : i32
    return %c0_i32, %c0_i32_0 : i32, i32
  }
}

module attributes {stable_mosaic.version = 11 : i64} {
  func.func @_fc_fused_kernel(%arg0: i32, %arg1: memref<2x132xf32, #tpu.memory_space<vmem>>, %arg2: memref<132x400xf32, #tpu.memory_space<vmem>>, %arg3: memref<1x400xf32, #tpu.memory_space<vmem>>, %arg4: memref<400x128xf32, #tpu.memory_space<vmem>>, %arg5: memref<1x128xf32, #tpu.memory_space<vmem>>, %arg6: memref<2x128xf32, #tpu.memory_space<vmem>>) attributes {dimension_semantics = [#tpu.dimension_semantics<arbitrary>], iteration_bounds = array<i64: 1>, scalar_prefetch = 0 : i64, scratch_operands = 0 : i64, tpu.core_type = #tpu.core_type<tc>, window_params = [{pipeline_mode = #tpu.pipeline_mode<synchronous>, transform_indices = @transform_0, window_bounds = array<i64: 2, 132>}, {pipeline_mode = #tpu.pipeline_mode<synchronous>, transform_indices = @transform_1, window_bounds = array<i64: 132, 400>}, {pipeline_mode = #tpu.pipeline_mode<synchronous>, transform_indices = @transform_2, window_bounds = array<i64: 1, 400>}, {pipeline_mode = #tpu.pipeline_mode<synchronous>, transform_indices = @transform_3, window_bounds = array<i64: 400, 128>}, {pipeline_mode = #tpu.pipeline_mode<synchronous>, transform_indices = @transform_4, window_bounds = array<i64: 1, 128>}, {pipeline_mode = #tpu.pipeline_mode<synchronous>, transform_indices = @transform_5, window_bounds = array<i64: 2, 128>}]} {
    %c0 = arith.constant 0 : index
    %c0_0 = arith.constant 0 : index
    %0 = vector.load %arg1[%c0, %c0_0] : memref<2x132xf32, #tpu.memory_space<vmem>>, vector<2x132xf32>
    %c0_1 = arith.constant 0 : index
    %c0_2 = arith.constant 0 : index
    %1 = vector.load %arg2[%c0_1, %c0_2] : memref<132x400xf32, #tpu.memory_space<vmem>>, vector<132x400xf32>
    %cst = arith.constant dense<0.000000e+00> : vector<2x400xf32>
    %2 = tpu.matmul %0, %1, %cst {dimension_numbers = #tpu.dot_dimension_numbers<[1], [0], [0], [1], [0, 0, 1, 1], [], []>} : vector<2x132xf32>, vector<132x400xf32>, vector<2x400xf32> -> vector<2x400xf32>
    %c0_3 = arith.constant 0 : index
    %c0_4 = arith.constant 0 : index
    %3 = vector.load %arg3[%c0_3, %c0_4] : memref<1x400xf32, #tpu.memory_space<vmem>>, vector<1x400xf32>
    %4 = vector.broadcast %3 : vector<1x400xf32> to vector<2x400xf32>
    %5 = arith.addf %2, %4 : vector<2x400xf32>
    %cst_5 = arith.constant 0.000000e+00 : f32
    %6 = vector.broadcast %cst_5 : f32 to vector<2x400xf32>
    %7 = arith.maximumf %5, %6 : vector<2x400xf32>
    %c0_6 = arith.constant 0 : index
    %c0_7 = arith.constant 0 : index
    %8 = vector.load %arg4[%c0_6, %c0_7] : memref<400x128xf32, #tpu.memory_space<vmem>>, vector<400x128xf32>
    %cst_8 = arith.constant dense<0.000000e+00> : vector<2x128xf32>
    %9 = tpu.matmul %7, %8, %cst_8 {dimension_numbers = #tpu.dot_dimension_numbers<[1], [0], [0], [1], [0, 0, 1, 1], [], []>} : vector<2x400xf32>, vector<400x128xf32>, vector<2x128xf32> -> vector<2x128xf32>
    %c0_9 = arith.constant 0 : index
    %c0_10 = arith.constant 0 : index
    %10 = vector.load %arg5[%c0_9, %c0_10] : memref<1x128xf32, #tpu.memory_space<vmem>>, vector<1x128xf32>
    %11 = vector.broadcast %10 : vector<1x128xf32> to vector<2x128xf32>
    %12 = arith.addf %9, %11 : vector<2x128xf32>
    %c0_11 = arith.constant 0 : index
    %c0_12 = arith.constant 0 : index
    %13 = vector.load %arg6[%c0_11, %c0_12] : memref<2x128xf32, #tpu.memory_space<vmem>>, vector<2x128xf32>
    tpu.vector_store %arg6[%c0_11, %c0_12], %12 {strides = array<i32>} : memref<2x128xf32, #tpu.memory_space<vmem>>, vector<2x128xf32>,
    return
  }
  func.func @transform_0(%arg0: i32) -> (i32, i32) {
    %c0_i32 = arith.constant 0 : i32
    %c0_i32_0 = arith.constant 0 : i32
    %c0_i32_1 = arith.constant 0 : i32
    return %c0_i32, %c0_i32_0 : i32, i32
  }
  func.func @transform_1(%arg0: i32) -> (i32, i32) {
    %c0_i32 = arith.constant 0 : i32
    %c0_i32_0 = arith.constant 0 : i32
    %c0_i32_1 = arith.constant 0 : i32
    return %c0_i32, %c0_i32_0 : i32, i32
  }
  func.func @transform_2(%arg0: i32) -> (i32, i32) {
    %c0_i32 = arith.constant 0 : i32
    %c0_i32_0 = arith.constant 0 : i32
    %c0_i32_1 = arith.constant 0 : i32
    return %c0_i32, %c0_i32_0 : i32, i32
  }
  func.func @transform_3(%arg0: i32) -> (i32, i32) {
    %c0_i32 = arith.constant 0 : i32
    %c0_i32_0 = arith.constant 0 : i32
    %c0_i32_1 = arith.constant 0 : i32
    return %c0_i32, %c0_i32_0 : i32, i32
  }
  func.func @transform_4(%arg0: i32) -> (i32, i32) {
    %c0_i32 = arith.constant 0 : i32
    %c0_i32_0 = arith.constant 0 : i32
    %c0_i32_1 = arith.constant 0 : i32
    return %c0_i32, %c0_i32_0 : i32, i32
  }
  func.func @transform_5(%arg0: i32) -> (i32, i32) {
    %c0_i32 = arith.constant 0 : i32
    %c0_i32_0 = arith.constant 0 : i32
    %c0_i32_1 = arith.constant 0 : i32
    return %c0_i32, %c0_i32_0 : i32, i32
  }
}

</mosaic_0001>

<llo_original>
// kernel: critic_forward.4
$region0: #{critic_forward.4}
  #allocation0 [shape = 'u32[]', space=smem, size = 0x4, offset = 0x4, fixed_abs, tag = 'smem constant byte address 0x4 - core index']
  #allocation1 [shape = 'u32[144,128]{1,0:T(1,128)}', space=vmem, size = 0x12000, scoped, tag = 'internal scratch']
  %s0 = inlined_call_operand.vmem [shape: f32[32,75], index: 0, kind: input, shape index: {}]
  %s1 = inlined_call_operand.vmem [shape: f32[75,648], index: 1, kind: input, shape index: {}]
  %s2 = inlined_call_operand.vmem [shape: f32[32,1], index: 2, kind: input, shape index: {}]
  %s3 = inlined_call_operand.vmem [shape: f32[32,648], index: 3, kind: output, shape index: {}]
  %s4 = sld [smem:[#allocation0]]
  $region22: #{critic_forward.4} parent=0
    _
  %s6 = ssub.s32 1, %s4
  %s7 = scalar_select 0, %s6, %s4
  // Predicated region
  $region2: #{critic_forward.4} parent=0 // pred_check
    _
  $region3: #{critic_forward.4} parent=0 // pred_check_branch
    %9 = sbr.rel (0) target = $region5
  $region4: #{critic_forward.4} parent=0 // pred_region
    _
  $region5: #{critic_forward.4} parent=0 // pred_fallthru
    _
  // Predicated region
  $region6: #{critic_forward.4} parent=0 // pred_check
    _
  $region7: #{critic_forward.4} parent=0 // pred_check_branch
    %11 = sbr.rel (0) target = $region9
  $region8: #{critic_forward.4} parent=0 // pred_region
    _
  $region9: #{critic_forward.4} parent=0 // pred_fallthru
    _
  // Predicated region
  $region10: #{critic_forward.4} parent=0 // pred_check
    _
  $region11: #{critic_forward.4} parent=0 // pred_check_branch
    %13 = sbr.rel (0) target = $region13
  $region12: #{critic_forward.4} parent=0 // pred_region
    _
  $region13: #{critic_forward.4} parent=0 // pred_fallthru
    _
  %v14 = vld [vmem:[%s0] sm:$0xff]
  %v15 = vld [vmem:[%s0 + $0x8] sm:$0xff]
  %v16 = vld [vmem:[%s0 + $0x10] sm:$0xff]
  %v17 = vld [vmem:[%s0 + $0x18] sm:$0xff]
  %v18 = vld [vmem:[%s1] sm:$0xff]
  %v19 = vld [vmem:[%s1 + $0x8] sm:$0xff]
  %v20 = vld [vmem:[%s1 + $0x10] sm:$0xff]
  %v21 = vld [vmem:[%s1 + $0x18] sm:$0xff]
  %v22 = vld [vmem:[%s1 + $0x20] sm:$0xff]
  %v23 = vld [vmem:[%s1 + $0x28] sm:$0xff]
  %v24 = vld [vmem:[%s1 + $0x30] sm:$0xff]
  %v25 = vld [vmem:[%s1 + $0x38] sm:$0xff]
  %v26 = vld [vmem:[%s1 + $0x40] sm:$0xff]
  %v27 = vld [vmem:[%s1 + $0x48] sm:$0xff]
  %v28 = vld [vmem:[%s1 + $0x50] sm:$0xff]
  %v29 = vld [vmem:[%s1 + $0x58] sm:$0xff]
  %v30 = vld [vmem:[%s1 + $0x60] sm:$0xff]
  %v31 = vld [vmem:[%s1 + $0x68] sm:$0xff]
  %v32 = vld [vmem:[%s1 + $0x70] sm:$0xff]
  %v33 = vld [vmem:[%s1 + $0x78] sm:$0xff]
  %v34 = vld [vmem:[%s1 + $0x80] sm:$0xff]
  %v35 = vld [vmem:[%s1 + $0x88] sm:$0xff]
  %v36 = vld [vmem:[%s1 + $0x90] sm:$0xff]
  %v37 = vld [vmem:[%s1 + $0x98] sm:$0xff]
  %v38 = vld [vmem:[%s1 + $0xa0] sm:$0xff]
  %v39 = vld [vmem:[%s1 + $0xa8] sm:$0xff]
  %v40 = vld [vmem:[%s1 + $0xb0] sm:$0xff]
  %v41 = vld [vmem:[%s1 + $0xb8] sm:$0xff]
  %v42 = vld [vmem:[%s1 + $0xc0] sm:$0xff]
  %v43 = vld [vmem:[%s1 + $0xc8] sm:$0xff]
  %v44 = vld [vmem:[%s1 + $0xd0] sm:$0xff]
  %v45 = vld [vmem:[%s1 + $0xd8] sm:$0xff]
  %v46 = vld [vmem:[%s1 + $0xe0] sm:$0xff]
  %v47 = vld [vmem:[%s1 + $0xe8] sm:$0xff]
  %v48 = vld [vmem:[%s1 + $0xf0] sm:$0xff]
  %v49 = vld [vmem:[%s1 + $0xf8] sm:$0xff]
  %v50 = vld [vmem:[%s1 + $0x100] sm:$0xff]
  %v51 = vld [vmem:[%s1 + $0x108] sm:$0xff]
  %v52 = vld [vmem:[%s1 + $0x110] sm:$0xff]
  %v53 = vld [vmem:[%s1 + $0x118] sm:$0xff]
  %v54 = vld [vmem:[%s1 + $0x120] sm:$0xff]
  %v55 = vld [vmem:[%s1 + $0x128] sm:$0xff]
  %v56 = vld [vmem:[%s1 + $0x130] sm:$0xff]
  %v57 = vld [vmem:[%s1 + $0x138] sm:$0xff]
  %v58 = vld [vmem:[%s1 + $0x140] sm:$0xff]
  %v59 = vld [vmem:[%s1 + $0x148] sm:$0xff]
  %v60 = vld [vmem:[%s1 + $0x150] sm:$0xff]
  %v61 = vld [vmem:[%s1 + $0x158] sm:$0xff]
  %v62 = vld [vmem:[%s1 + $0x160] sm:$0xff]
  %v63 = vld [vmem:[%s1 + $0x168] sm:$0xff]
  %v64 = vld [vmem:[%s1 + $0x170] sm:$0xff]
  %v65 = vld [vmem:[%s1 + $0x178] sm:$0xff]
  %v66 = vld [vmem:[%s1 + $0x180] sm:$0xff]
  %v67 = vld [vmem:[%s1 + $0x188] sm:$0xff]
  %v68 = vld [vmem:[%s1 + $0x190] sm:$0xff]
  %v69 = vld [vmem:[%s1 + $0x198] sm:$0xff]
  %v70 = vld [vmem:[%s1 + $0x1a0] sm:$0xff]
  %v71 = vld [vmem:[%s1 + $0x1a8] sm:$0xff]
  %v72 = vld [vmem:[%s1 + $0x1b0] sm:$0x7]
  %v73 = vld [vmem:[%s1 + $0x1b8] sm:$0x7]
  %v74 = vld [vmem:[%s1 + $0x1c0] sm:$0x7]
  %v75 = vld [vmem:[%s1 + $0x1c8] sm:$0x7]
  %v76 = vld [vmem:[%s1 + $0x1d0] sm:$0x7]
  %v77 = vld [vmem:[%s1 + $0x1d8] sm:$0x7]
  %v78 = vld [vmem:[%s2] sm:$0xff]
  %v79 = vld [vmem:[%s2 + $0x8] sm:$0xff]
  %v80 = vld [vmem:[%s2 + $0x10] sm:$0xff]
  %v81 = vld [vmem:[%s2 + $0x18] sm:$0xff]
  %83 = vset.pattern.permute.xlu0 0
  %84 = vperm.xlu0 %83, %v78
  %v85 = vpop.permute.xlu0 %84
  %88 = vset.pattern.permute.xlu0 0
  %89 = vperm.xlu0 %88, %v79
  %v90 = vpop.permute.xlu0 %89
  %93 = vset.pattern.permute.xlu0 0
  %94 = vperm.xlu0 %93, %v80
  %v95 = vpop.permute.xlu0 %94
  %98 = vset.pattern.permute.xlu0 0
  %99 = vperm.xlu0 %98, %v81
  %v100 = vpop.permute.xlu0 %99
  %vm102 = vcmask 613376
  %v104 = vsel %vm102, %v14, 0
  %v107 = vsel %vm102, %v15, 0
  %v110 = vsel %vm102, %v16, 0
  %v113 = vsel %vm102, %v17, 0
  %vm115 = vcmask 1042432
  %v117 = vsel %vm115, %v72, 0
  %v120 = vsel %vm115, %v73, 0
  %v123 = vsel %vm115, %v74, 0
  %v126 = vsel %vm115, %v75, 0
  %v129 = vsel %vm115, %v76, 0
  %v132 = vsel %vm115, %v77, 0
  %134 = vmatprep.subr.mxu0 0.0
  %135 = vmatpush1.msra.mxu0 0.0
  %136 = vmatprep.subr.mxu0 0.0
  %137 = vmatpush1.msra.mxu0 0.0
  %138 = vmatprep.subr.mxu0 0.0
  %139 = vmatpush1.msra.mxu0 0.0
  %140 = vmatprep.subr.mxu0 0.0
  %141 = vmatpush1.msra.mxu0 0.0
  %142 = vmatprep.subr.mxu0 0.0
  %143 = vmatpush1.msra.mxu0 0.0
  %144 = vmatprep.subr.mxu0 0.0
  %145 = vmatpush1.msra.mxu0 0.0
  %146 = vmatprep.subr.mxu0 %v120
  %147 = vmatpush1.msra.mxu0 %v117
  %148 = vmatprep.subr.mxu0 %v67
  %149 = vmatpush1.msra.mxu0 %v66
  %150 = vmatprep.subr.mxu0 %v61
  %151 = vmatpush1.msra.mxu0 %v60
  %152 = vmatprep.subr.mxu0 %v55
  %153 = vmatpush1.msra.mxu0 %v54
  %154 = vmatprep.subr.mxu0 %v49
  %155 = vmatpush1.msra.mxu0 %v48
  %156 = vmatprep.subr.mxu0 %v43
  %157 = vmatpush1.msra.mxu0 %v42
  %158 = vmatprep.subr.mxu0 %v37
  %159 = vmatpush1.msra.mxu0 %v36
  %160 = vmatprep.subr.mxu0 %v31
  %161 = vmatpush1.msra.mxu0 %v30
  %162 = vmatprep.subr.mxu0 %v25
  %163 = vmatpush1.msra.mxu0 %v24
  %164 = vmatprep.subr.mxu0 %v19
  %165 = vmatpush1.msra.mxu0 %v18
  %166 = vmatprep.subr.mxu0 0.0
  %167 = vmatpush2.msra.mxu0 0.0
  %168 = vmatprep.subr.mxu0 0.0
  %169 = vmatpush2.msra.mxu0 0.0
  %170 = vmatprep.subr.mxu0 0.0
  %171 = vmatpush2.msra.mxu0 0.0
  %172 = vmatprep.subr.mxu0 0.0
  %173 = vmatpush2.msra.mxu0 0.0
  %174 = vmatprep.subr.mxu0 0.0
  %175 = vmatpush2.msra.mxu0 0.0
  %176 = vmatprep.subr.mxu0 0.0
  %177 = vmatpush2.msra.mxu0 0.0
  %178 = vmatprep.subr.mxu0 0.0
  %179 = vmatpush2.msra.mxu0 0.0
  %180 = vmatprep.subr.mxu0 0.0
  %181 = vmatpush2.msra.mxu0 0.0
  %182 = vmatprep.subr.mxu0 0.0
  %183 = vmatpush2.msra.mxu0 0.0
  %184 = vmatprep.subr.mxu0 0.0
  %185 = vmatpush2.msra.mxu0 0.0
  %186 = vmatprep.subr.mxu0 0.0
  %187 = vmatpush2.msra.mxu0 0.0
  %188 = vmatprep.subr.mxu0 0.0
  %189 = vmatpush2.msra.mxu0 0.0
  %190 = vmatprep.subr.mxu0 0.0
  %191 = vmatpush2.msra.mxu0 0.0
  %192 = vmatprep.subr.mxu0 0.0
  %193 = vmatpush2.msra.mxu0 0.0
  %194 = vmatprep.subr.mxu0 0.0
  %195 = vmatpush2.msra.mxu0 0.0
  %196 = vmatprep.subr.mxu0 0.0
  %197 = vmatpush2.msra.mxu0 0.0
  %198 = vmatprep.mubr.f32.mxu0 0.0
  %199 = vmatmul.mubr.f32.gmra.mxu0 %v104
  %v200 = vpop.f32.mrf.mxu0
  %v201 = vadd.f32 %v85, %v200
  %v202 = vpop.f32.mrf.mxu0
  %v203 = vadd.f32 %v85, %v202
  %204 = vmatprep.mubr.f32.mxu0 0.0
  %205 = vmatmul.mubr.f32.gmra.mxu0 %v107
  %v206 = vpop.f32.mrf.mxu0
  %v207 = vadd.f32 %v90, %v206
  %v208 = vpop.f32.mrf.mxu0
  %v209 = vadd.f32 %v90, %v208
  %210 = vmatprep.mubr.f32.mxu0 0.0
  %211 = vmatmul.mubr.f32.gmra.mxu0 %v110
  %v212 = vpop.f32.mrf.mxu0
  %v213 = vadd.f32 %v95, %v212
  %v214 = vpop.f32.mrf.mxu0
  %v215 = vadd.f32 %v95, %v214
  %216 = vmatprep.mubr.f32.mxu0 0.0
  %217 = vmatmul.mubr.f32.gmra.mxu0 %v113
  %v218 = vpop.f32.mrf.mxu0
  %v219 = vadd.f32 %v100, %v218
  %v220 = vpop.f32.mrf.mxu0
  %v221 = vadd.f32 %v100, %v220
  %222 = vdwg.mxu0
  %223 = vmatprep.subr.mxu0 0.0
  %224 = vmatpush1.msra.mxu0 0.0
  %225 = vmatprep.subr.mxu0 0.0
  %226 = vmatpush1.msra.mxu0 0.0
  %227 = vmatprep.subr.mxu0 0.0
  %228 = vmatpush1.msra.mxu0 0.0
  %229 = vmatprep.subr.mxu0 0.0
  %230 = vmatpush1.msra.mxu0 0.0
  %231 = vmatprep.subr.mxu0 0.0
  %232 = vmatpush1.msra.mxu0 0.0
  %233 = vmatprep.subr.mxu0 0.0
  %234 = vmatpush1.msra.mxu0 0.0
  %235 = vmatprep.subr.mxu0 %v126
  %236 = vmatpush1.msra.mxu0 %v123
  %237 = vmatprep.subr.mxu0 %v69
  %238 = vmatpush1.msra.mxu0 %v68
  %239 = vmatprep.subr.mxu0 %v63
  %240 = vmatpush1.msra.mxu0 %v62
  %241 = vmatprep.subr.mxu0 %v57
  %242 = vmatpush1.msra.mxu0 %v56
  %243 = vmatprep.subr.mxu0 %v51
  %244 = vmatpush1.msra.mxu0 %v50
  %245 = vmatprep.subr.mxu0 %v45
  %246 = vmatpush1.msra.mxu0 %v44
  %247 = vmatprep.subr.mxu0 %v39
  %248 = vmatpush1.msra.mxu0 %v38
  %249 = vmatprep.subr.mxu0 %v33
  %250 = vmatpush1.msra.mxu0 %v32
  %251 = vmatprep.subr.mxu0 %v27
  %252 = vmatpush1.msra.mxu0 %v26
  %253 = vmatprep.subr.mxu0 %v21
  %254 = vmatpush1.msra.mxu0 %v20
  %255 = vmatprep.subr.mxu0 0.0
  %256 = vmatpush2.msra.mxu0 0.0
  %257 = vmatprep.subr.mxu0 0.0
  %258 = vmatpush2.msra.mxu0 0.0
  %259 = vmatprep.subr.mxu0 0.0
  %260 = vmatpush2.msra.mxu0 0.0
  %261 = vmatprep.subr.mxu0 0.0
  %262 = vmatpush2.msra.mxu0 0.0
  %263 = vmatprep.subr.mxu0 0.0
  %264 = vmatpush2.msra.mxu0 0.0
  %265 = vmatprep.subr.mxu0 0.0
  %266 = vmatpush2.msra.mxu0 0.0
  %267 = vmatprep.subr.mxu0 0.0
  %268 = vmatpush2.msra.mxu0 0.0
  %269 = vmatprep.subr.mxu0 0.0
  %270 = vmatpush2.msra.mxu0 0.0
  %271 = vmatprep.subr.mxu0 0.0
  %272 = vmatpush2.msra.mxu0 0.0
  %273 = vmatprep.subr.mxu0 0.0
  %274 = vmatpush2.msra.mxu0 0.0
  %275 = vmatprep.subr.mxu0 0.0
  %276 = vmatpush2.msra.mxu0 0.0
  %277 = vmatprep.subr.mxu0 0.0
  %278 = vmatpush2.msra.mxu0 0.0
  %279 = vmatprep.subr.mxu0 0.0
  %280 = vmatpush2.msra.mxu0 0.0
  %281 = vmatprep.subr.mxu0 0.0
  %282 = vmatpush2.msra.mxu0 0.0
  %283 = vmatprep.subr.mxu0 0.0
  %284 = vmatpush2.msra.mxu0 0.0
  %285 = vmatprep.subr.mxu0 0.0
  %286 = vmatpush2.msra.mxu0 0.0
  %287 = vmatprep.mubr.f32.mxu0 0.0
  %288 = vmatmul.mubr.f32.gmra.mxu0 %v104
  %v289 = vpop.f32.mrf.mxu0
  %v290 = vadd.f32 %v85, %v289
  %v291 = vpop.f32.mrf.mxu0
  %v292 = vadd.f32 %v85, %v291
  %293 = vmatprep.mubr.f32.mxu0 0.0
  %294 = vmatmul.mubr.f32.gmra.mxu0 %v107
  %v295 = vpop.f32.mrf.mxu0
  %v296 = vadd.f32 %v90, %v295
  %v297 = vpop.f32.mrf.mxu0
  %v298 = vadd.f32 %v90, %v297
  %299 = vmatprep.mubr.f32.mxu0 0.0
  %300 = vmatmul.mubr.f32.gmra.mxu0 %v110
  %v301 = vpop.f32.mrf.mxu0
  %v302 = vadd.f32 %v95, %v301
  %v303 = vpop.f32.mrf.mxu0
  %v304 = vadd.f32 %v95, %v303
  %305 = vmatprep.mubr.f32.mxu0 0.0
  %306 = vmatmul.mubr.f32.gmra.mxu0 %v113
  %v307 = vpop.f32.mrf.mxu0
  %v308 = vadd.f32 %v100, %v307
  %v309 = vpop.f32.mrf.mxu0
  %v310 = vadd.f32 %v100, %v309
  %311 = vdwg.mxu0
  %312 = vmatprep.subr.mxu0 0.0
  %313 = vmatpush1.msra.mxu0 0.0
  %314 = vmatprep.subr.mxu0 0.0
  %315 = vmatpush1.msra.mxu0 0.0
  %316 = vmatprep.subr.mxu0 0.0
  %317 = vmatpush1.msra.mxu0 0.0
  %318 = vmatprep.subr.mxu0 0.0
  %319 = vmatpush1.msra.mxu0 0.0
  %320 = vmatprep.subr.mxu0 0.0
  %321 = vmatpush1.msra.mxu0 0.0
  %322 = vmatprep.subr.mxu0 0.0
  %323 = vmatpush1.msra.mxu0 0.0
  %324 = vmatprep.subr.mxu0 %v132
  %325 = vmatpush1.msra.mxu0 %v129
  %326 = vmatprep.subr.mxu0 %v71
  %327 = vmatpush1.msra.mxu0 %v70
  %328 = vmatprep.subr.mxu0 %v65
  %329 = vmatpush1.msra.mxu0 %v64
  %330 = vmatprep.subr.mxu0 %v59
  %331 = vmatpush1.msra.mxu0 %v58
  %332 = vmatprep.subr.mxu0 %v53
  %333 = vmatpush1.msra.mxu0 %v52
  %334 = vmatprep.subr.mxu0 %v47
  %335 = vmatpush1.msra.mxu0 %v46
  %336 = vmatprep.subr.mxu0 %v41
  %337 = vmatpush1.msra.mxu0 %v40
  %338 = vmatprep.subr.mxu0 %v35
  %339 = vmatpush1.msra.mxu0 %v34
  %340 = vmatprep.subr.mxu0 %v29
  %341 = vmatpush1.msra.mxu0 %v28
  %342 = vmatprep.subr.mxu0 %v23
  %343 = vmatpush1.msra.mxu0 %v22
  %344 = vmatprep.subr.mxu0 0.0
  %345 = vmatpush2.msra.mxu0 0.0
  %346 = vmatprep.subr.mxu0 0.0
  %347 = vmatpush2.msra.mxu0 0.0
  %348 = vmatprep.subr.mxu0 0.0
  %349 = vmatpush2.msra.mxu0 0.0
  %350 = vmatprep.subr.mxu0 0.0
  %351 = vmatpush2.msra.mxu0 0.0
  %352 = vmatprep.subr.mxu0 0.0
  %353 = vmatpush2.msra.mxu0 0.0
  %354 = vmatprep.subr.mxu0 0.0
  %355 = vmatpush2.msra.mxu0 0.0
  %356 = vmatprep.subr.mxu0 0.0
  %357 = vmatpush2.msra.mxu0 0.0
  %358 = vmatprep.subr.mxu0 0.0
  %359 = vmatpush2.msra.mxu0 0.0
  %360 = vmatprep.subr.mxu0 0.0
  %361 = vmatpush2.msra.mxu0 0.0
  %362 = vmatprep.subr.mxu0 0.0
  %363 = vmatpush2.msra.mxu0 0.0
  %364 = vmatprep.subr.mxu0 0.0
  %365 = vmatpush2.msra.mxu0 0.0
  %366 = vmatprep.subr.mxu0 0.0
  %367 = vmatpush2.msra.mxu0 0.0
  %368 = vmatprep.subr.mxu0 0.0
  %369 = vmatpush2.msra.mxu0 0.0
  %370 = vmatprep.subr.mxu0 0.0
  %371 = vmatpush2.msra.mxu0 0.0
  %372 = vmatprep.subr.mxu0 0.0
  %373 = vmatpush2.msra.mxu0 0.0
  %374 = vmatprep.subr.mxu0 0.0
  %375 = vmatpush2.msra.mxu0 0.0
  %376 = vmatprep.mubr.f32.mxu0 0.0
  %377 = vmatmul.mubr.f32.gmra.mxu0 %v104
  %v378 = vpop.f32.mrf.mxu0
  %v379 = vadd.f32 %v85, %v378
  %v380 = vpop.f32.mrf.mxu0
  %v381 = vadd.f32 %v85, %v380
  %382 = vmatprep.mubr.f32.mxu0 0.0
  %383 = vmatmul.mubr.f32.gmra.mxu0 %v107
  %v384 = vpop.f32.mrf.mxu0
  %v385 = vadd.f32 %v90, %v384
  %v386 = vpop.f32.mrf.mxu0
  %v387 = vadd.f32 %v90, %v386
  %388 = vmatprep.mubr.f32.mxu0 0.0
  %389 = vmatmul.mubr.f32.gmra.mxu0 %v110
  %v390 = vpop.f32.mrf.mxu0
  %v391 = vadd.f32 %v95, %v390
  %v392 = vpop.f32.mrf.mxu0
  %v393 = vadd.f32 %v95, %v392
  %394 = vmatprep.mubr.f32.mxu0 0.0
  %395 = vmatmul.mubr.f32.gmra.mxu0 %v113
  %v396 = vpop.f32.mrf.mxu0
  %v397 = vadd.f32 %v100, %v396
  %v398 = vpop.f32.mrf.mxu0
  %v399 = vadd.f32 %v100, %v398
  %400 = vdwg.mxu0
  %v401 = vmax.f32 %v201, 0.0
  %v402 = vmax.f32 %v203, 0.0
  %v403 = vmax.f32 %v290, 0.0
  %v404 = vmax.f32 %v292, 0.0
  %v405 = vmax.f32 %v379, 0.0
  %v406 = vmax.f32 %v381, 0.0
  %v407 = vmax.f32 %v207, 0.0
  %v408 = vmax.f32 %v209, 0.0
  %v409 = vmax.f32 %v296, 0.0
  %v410 = vmax.f32 %v298, 0.0
  %v411 = vmax.f32 %v385, 0.0
  %v412 = vmax.f32 %v387, 0.0
  %v413 = vmax.f32 %v213, 0.0
  %v414 = vmax.f32 %v215, 0.0
  %v415 = vmax.f32 %v302, 0.0
  %v416 = vmax.f32 %v304, 0.0
  %v417 = vmax.f32 %v391, 0.0
  %v418 = vmax.f32 %v393, 0.0
  %v419 = vmax.f32 %v219, 0.0
  %v420 = vmax.f32 %v221, 0.0
  %v421 = vmax.f32 %v308, 0.0
  %v422 = vmax.f32 %v310, 0.0
  %v423 = vmax.f32 %v397, 0.0
  %v424 = vmax.f32 %v399, 0.0
  %425 = vst [vmem:[%s3] sm:$0xff] %v401
  %426 = vst [vmem:[%s3 + $0x8] sm:$0xff] %v402
  %427 = vst [vmem:[%s3 + $0x10] sm:$0xff] %v403
  %428 = vst [vmem:[%s3 + $0x18] sm:$0xff] %v404
  %429 = vst [vmem:[%s3 + $0x20] sm:$0xff] %v405
  %vm430 = vcmask 64512
  %431 = vst.msk [vmem:[%s3 + $0x28] sm:$0xff] %vm430, %v406
  %432 = vst [vmem:[%s3 + $0x30] sm:$0xff] %v407
  %433 = vst [vmem:[%s3 + $0x38] sm:$0xff] %v408
  %434 = vst [vmem:[%s3 + $0x40] sm:$0xff] %v409
  %435 = vst [vmem:[%s3 + $0x48] sm:$0xff] %v410
  %436 = vst [vmem:[%s3 + $0x50] sm:$0xff] %v411
  %437 = vst.msk [vmem:[%s3 + $0x58] sm:$0xff] %vm430, %v412
  %438 = vst [vmem:[%s3 + $0x60] sm:$0xff] %v413
  %439 = vst [vmem:[%s3 + $0x68] sm:$0xff] %v414
  %440 = vst [vmem:[%s3 + $0x70] sm:$0xff] %v415
  %441 = vst [vmem:[%s3 + $0x78] sm:$0xff] %v416
  %442 = vst [vmem:[%s3 + $0x80] sm:$0xff] %v417
  %443 = vst.msk [vmem:[%s3 + $0x88] sm:$0xff] %vm430, %v418
  %444 = vst [vmem:[%s3 + $0x90] sm:$0xff] %v419
  %445 = vst [vmem:[%s3 + $0x98] sm:$0xff] %v420
  %446 = vst [vmem:[%s3 + $0xa0] sm:$0xff] %v421
  %447 = vst [vmem:[%s3 + $0xa8] sm:$0xff] %v422
  %448 = vst [vmem:[%s3 + $0xb0] sm:$0xff] %v423
  %449 = vst.msk [vmem:[%s3 + $0xb8] sm:$0xff] %vm430, %v424
  // Predicated region
  $region14: #{critic_forward.4} parent=0 // pred_check
    _
  $region15: #{critic_forward.4} parent=0 // pred_check_branch
    %451 = sbr.rel (0) target = $region17
  $region16: #{critic_forward.4} parent=0 // pred_region
    _
  $region17: #{critic_forward.4} parent=0 // pred_fallthru
    _
  // Predicated region
  $region18: #{critic_forward.4} parent=0 // pred_check
    _
  $region19: #{critic_forward.4} parent=0 // pred_check_branch
    %453 = sbr.rel (0) target = $region21
  $region20: #{critic_forward.4} parent=0 // pred_region
    _
  $region21: #{critic_forward.4} parent=0 // pred_fallthru
    _

// kernel: critic_forward.5
$region0: #{critic_forward.5}
  #allocation0 [shape = 'u32[]', space=smem, size = 0x4, offset = 0x4, fixed_abs, tag = 'smem constant byte address 0x4 - core index']
  #allocation1 [shape = 'u32[144,128]{1,0:T(1,128)}', space=vmem, size = 0x12000, scoped, tag = 'internal scratch']
  %s0 = inlined_call_operand.vmem [shape: f32[32,800], index: 0, kind: input, shape index: {}]
  %s1 = inlined_call_operand.vmem [shape: f32[800,98], index: 1, kind: input, shape index: {}]
  %s2 = inlined_call_operand.vmem [shape: f32[32,1], index: 2, kind: input, shape index: {}]
  %s3 = inlined_call_operand.vmem [shape: f32[32,98], index: 3, kind: output, shape index: {}]
  %s4 = sld [smem:[#allocation0]]
  $region22: #{critic_forward.5} parent=0
    _
  %s6 = ssub.s32 1, %s4
  %s7 = scalar_select 0, %s6, %s4
  // Predicated region
  $region2: #{critic_forward.5} parent=0 // pred_check
    _
  $region3: #{critic_forward.5} parent=0 // pred_check_branch
    %9 = sbr.rel (0) target = $region5
  $region4: #{critic_forward.5} parent=0 // pred_region
    _
  $region5: #{critic_forward.5} parent=0 // pred_fallthru
    _
  // Predicated region
  $region6: #{critic_forward.5} parent=0 // pred_check
    _
  $region7: #{critic_forward.5} parent=0 // pred_check_branch
    %11 = sbr.rel (0) target = $region9
  $region8: #{critic_forward.5} parent=0 // pred_region
    _
  $region9: #{critic_forward.5} parent=0 // pred_fallthru
    _
  // Predicated region
  $region10: #{critic_forward.5} parent=0 // pred_check
    _
  $region11: #{critic_forward.5} parent=0 // pred_check_branch
    %13 = sbr.rel (0) target = $region13
  $region12: #{critic_forward.5} parent=0 // pred_region
    _
  $region13: #{critic_forward.5} parent=0 // pred_fallthru
    _
  %v14 = vld [vmem:[%s0] sm:$0xff]
  %v15 = vld [vmem:[%s0 + $0x8] sm:$0xff]
  %v16 = vld [vmem:[%s0 + $0x10] sm:$0xff]
  %v17 = vld [vmem:[%s0 + $0x18] sm:$0xff]
  %v18 = vld [vmem:[%s0 + $0x20] sm:$0xff]
  %v19 = vld [vmem:[%s0 + $0x28] sm:$0xff]
  %v20 = vld [vmem:[%s0 + $0x30] sm:$0xff]
  %v21 = vld [vmem:[%s0 + $0x38] sm:$0xff]
  %v22 = vld [vmem:[%s0 + $0x40] sm:$0xff]
  %v23 = vld [vmem:[%s0 + $0x48] sm:$0xff]
  %v24 = vld [vmem:[%s0 + $0x50] sm:$0xff]
  %v25 = vld [vmem:[%s0 + $0x58] sm:$0xff]
  %v26 = vld [vmem:[%s0 + $0x60] sm:$0xff]
  %v27 = vld [vmem:[%s0 + $0x68] sm:$0xff]
  %v28 = vld [vmem:[%s0 + $0x70] sm:$0xff]
  %v29 = vld [vmem:[%s0 + $0x78] sm:$0xff]
  %v30 = vld [vmem:[%s0 + $0x80] sm:$0xff]
  %v31 = vld [vmem:[%s0 + $0x88] sm:$0xff]
  %v32 = vld [vmem:[%s0 + $0x90] sm:$0xff]
  %v33 = vld [vmem:[%s0 + $0x98] sm:$0xff]
  %v34 = vld [vmem:[%s0 + $0xa0] sm:$0xff]
  %v35 = vld [vmem:[%s0 + $0xa8] sm:$0xff]
  %v36 = vld [vmem:[%s0 + $0xb0] sm:$0xff]
  %v37 = vld [vmem:[%s0 + $0xb8] sm:$0xff]
  %v38 = vld [vmem:[%s0 + $0xc0] sm:$0xff]
  %v39 = vld [vmem:[%s0 + $0xc8] sm:$0xff]
  %v40 = vld [vmem:[%s0 + $0xd0] sm:$0xff]
  %v41 = vld [vmem:[%s0 + $0xd8] sm:$0xff]
  %v42 = vld [vmem:[%s1] sm:$0xff]
  %v43 = vld [vmem:[%s1 + $0x8] sm:$0xff]
  %v44 = vld [vmem:[%s1 + $0x10] sm:$0xff]
  %v45 = vld [vmem:[%s1 + $0x18] sm:$0xff]
  %v46 = vld [vmem:[%s1 + $0x20] sm:$0xff]
  %v47 = vld [vmem:[%s1 + $0x28] sm:$0xff]
  %v48 = vld [vmem:[%s1 + $0x30] sm:$0xff]
  %v49 = vld [vmem:[%s1 + $0x38] sm:$0xff]
  %v50 = vld [vmem:[%s1 + $0x40] sm:$0xff]
  %v51 = vld [vmem:[%s1 + $0x48] sm:$0xff]
  %v52 = vld [vmem:[%s1 + $0x50] sm:$0xff]
  %v53 = vld [vmem:[%s1 + $0x58] sm:$0xff]
  %v54 = vld [vmem:[%s1 + $0x60] sm:$0xff]
  %v55 = vld [vmem:[%s1 + $0x68] sm:$0xff]
  %v56 = vld [vmem:[%s1 + $0x70] sm:$0xff]
  %v57 = vld [vmem:[%s1 + $0x78] sm:$0xff]
  %v58 = vld [vmem:[%s1 + $0x80] sm:$0xff]
  %v59 = vld [vmem:[%s1 + $0x88] sm:$0xff]
  %v60 = vld [vmem:[%s1 + $0x90] sm:$0xff]
  %v61 = vld [vmem:[%s1 + $0x98] sm:$0xff]
  %v62 = vld [vmem:[%s1 + $0xa0] sm:$0xff]
  %v63 = vld [vmem:[%s1 + $0xa8] sm:$0xff]
  %v64 = vld [vmem:[%s1 + $0xb0] sm:$0xff]
  %v65 = vld [vmem:[%s1 + $0xb8] sm:$0xff]
  %v66 = vld [vmem:[%s1 + $0xc0] sm:$0xff]
  %v67 = vld [vmem:[%s1 + $0xc8] sm:$0xff]
  %v68 = vld [vmem:[%s1 + $0xd0] sm:$0xff]
  %v69 = vld [vmem:[%s1 + $0xd8] sm:$0xff]
  %v70 = vld [vmem:[%s1 + $0xe0] sm:$0xff]
  %v71 = vld [vmem:[%s1 + $0xe8] sm:$0xff]
  %v72 = vld [vmem:[%s1 + $0xf0] sm:$0xff]
  %v73 = vld [vmem:[%s1 + $0xf8] sm:$0xff]
  %v74 = vld [vmem:[%s1 + $0x100] sm:$0xff]
  %v75 = vld [vmem:[%s1 + $0x108] sm:$0xff]
  %v76 = vld [vmem:[%s1 + $0x110] sm:$0xff]
  %v77 = vld [vmem:[%s1 + $0x118] sm:$0xff]
  %v78 = vld [vmem:[%s1 + $0x120] sm:$0xff]
  %v79 = vld [vmem:[%s1 + $0x128] sm:$0xff]
  %v80 = vld [vmem:[%s1 + $0x130] sm:$0xff]
  %v81 = vld [vmem:[%s1 + $0x138] sm:$0xff]
  %v82 = vld [vmem:[%s1 + $0x140] sm:$0xff]
  %v83 = vld [vmem:[%s1 + $0x148] sm:$0xff]
  %v84 = vld [vmem:[%s1 + $0x150] sm:$0xff]
  %v85 = vld [vmem:[%s1 + $0x158] sm:$0xff]
  %v86 = vld [vmem:[%s1 + $0x160] sm:$0xff]
  %v87 = vld [vmem:[%s1 + $0x168] sm:$0xff]
  %v88 = vld [vmem:[%s1 + $0x170] sm:$0xff]
  %v89 = vld [vmem:[%s1 + $0x178] sm:$0xff]
  %v90 = vld [vmem:[%s1 + $0x180] sm:$0xff]
  %v91 = vld [vmem:[%s1 + $0x188] sm:$0xff]
  %v92 = vld [vmem:[%s1 + $0x190] sm:$0xff]
  %v93 = vld [vmem:[%s1 + $0x198] sm:$0xff]
  %v94 = vld [vmem:[%s1 + $0x1a0] sm:$0xff]
  %v95 = vld [vmem:[%s1 + $0x1a8] sm:$0xff]
  %v96 = vld [vmem:[%s1 + $0x1b0] sm:$0xff]
  %v97 = vld [vmem:[%s1 + $0x1b8] sm:$0xff]
  %v98 = vld [vmem:[%s1 + $0x1c0] sm:$0xff]
  %v99 = vld [vmem:[%s1 + $0x1c8] sm:$0xff]
  %v100 = vld [vmem:[%s1 + $0x1d0] sm:$0xff]
  %v101 = vld [vmem:[%s1 + $0x1d8] sm:$0xff]
  %v102 = vld [vmem:[%s1 + $0x1e0] sm:$0xff]
  %v103 = vld [vmem:[%s1 + $0x1e8] sm:$0xff]
  %v104 = vld [vmem:[%s1 + $0x1f0] sm:$0xff]
  %v105 = vld [vmem:[%s1 + $0x1f8] sm:$0xff]
  %v106 = vld [vmem:[%s1 + $0x200] sm:$0xff]
  %v107 = vld [vmem:[%s1 + $0x208] sm:$0xff]
  %v108 = vld [vmem:[%s1 + $0x210] sm:$0xff]
  %v109 = vld [vmem:[%s1 + $0x218] sm:$0xff]
  %v110 = vld [vmem:[%s1 + $0x220] sm:$0xff]
  %v111 = vld [vmem:[%s1 + $0x228] sm:$0xff]
  %v112 = vld [vmem:[%s1 + $0x230] sm:$0xff]
  %v113 = vld [vmem:[%s1 + $0x238] sm:$0xff]
  %v114 = vld [vmem:[%s1 + $0x240] sm:$0xff]
  %v115 = vld [vmem:[%s1 + $0x248] sm:$0xff]
  %v116 = vld [vmem:[%s1 + $0x250] sm:$0xff]
  %v117 = vld [vmem:[%s1 + $0x258] sm:$0xff]
  %v118 = vld [vmem:[%s1 + $0x260] sm:$0xff]
  %v119 = vld [vmem:[%s1 + $0x268] sm:$0xff]
  %v120 = vld [vmem:[%s1 + $0x270] sm:$0xff]
  %v121 = vld [vmem:[%s1 + $0x278] sm:$0xff]
  %v122 = vld [vmem:[%s1 + $0x280] sm:$0xff]
  %v123 = vld [vmem:[%s1 + $0x288] sm:$0xff]
  %v124 = vld [vmem:[%s1 + $0x290] sm:$0xff]
  %v125 = vld [vmem:[%s1 + $0x298] sm:$0xff]
  %v126 = vld [vmem:[%s1 + $0x2a0] sm:$0xff]
  %v127 = vld [vmem:[%s1 + $0x2a8] sm:$0xff]
  %v128 = vld [vmem:[%s1 + $0x2b0] sm:$0xff]
  %v129 = vld [vmem:[%s1 + $0x2b8] sm:$0xff]
  %v130 = vld [vmem:[%s1 + $0x2c0] sm:$0xff]
  %v131 = vld [vmem:[%s1 + $0x2c8] sm:$0xff]
  %v132 = vld [vmem:[%s1 + $0x2d0] sm:$0xff]
  %v133 = vld [vmem:[%s1 + $0x2d8] sm:$0xff]
  %v134 = vld [vmem:[%s1 + $0x2e0] sm:$0xff]
  %v135 = vld [vmem:[%s1 + $0x2e8] sm:$0xff]
  %v136 = vld [vmem:[%s1 + $0x2f0] sm:$0xff]
  %v137 = vld [vmem:[%s1 + $0x2f8] sm:$0xff]
  %v138 = vld [vmem:[%s1 + $0x300] sm:$0xff]
  %v139 = vld [vmem:[%s1 + $0x308] sm:$0xff]
  %v140 = vld [vmem:[%s1 + $0x310] sm:$0xff]
  %v141 = vld [vmem:[%s1 + $0x318] sm:$0xff]
  %v142 = vld [vmem:[%s2] sm:$0xff]
  %v143 = vld [vmem:[%s2 + $0x8] sm:$0xff]
  %v144 = vld [vmem:[%s2 + $0x10] sm:$0xff]
  %v145 = vld [vmem:[%s2 + $0x18] sm:$0xff]
  %147 = vset.pattern.permute.xlu0 0
  %148 = vperm.xlu0 %147, %v142
  %v149 = vpop.permute.xlu0 %148
  %152 = vset.pattern.permute.xlu0 0
  %153 = vperm.xlu0 %152, %v143
  %v154 = vpop.permute.xlu0 %153
  %157 = vset.pattern.permute.xlu0 0
  %158 = vperm.xlu0 %157, %v144
  %v159 = vpop.permute.xlu0 %158
  %162 = vset.pattern.permute.xlu0 0
  %163 = vperm.xlu0 %162, %v145
  %v164 = vpop.permute.xlu0 %163
  %vm166 = vcmask 261120
  %v168 = vsel %vm166, %v20, 0
  %v171 = vsel %vm166, %v27, 0
  %v174 = vsel %vm166, %v34, 0
  %v177 = vsel %vm166, %v41, 0
  %179 = vmatprep.subr.mxu0 0.0
  %180 = vmatpush1.msra.mxu0 %v57
  %181 = vmatprep.subr.mxu0 0.0
  %182 = vmatpush1.msra.mxu0 %v56
  %183 = vmatprep.subr.mxu0 0.0
  %184 = vmatpush1.msra.mxu0 %v55
  %185 = vmatprep.subr.mxu0 0.0
  %186 = vmatpush1.msra.mxu0 %v54
  %187 = vmatprep.subr.mxu0 0.0
  %188 = vmatpush1.msra.mxu0 %v53
  %189 = vmatprep.subr.mxu0 0.0
  %190 = vmatpush1.msra.mxu0 %v52
  %191 = vmatprep.subr.mxu0 0.0
  %192 = vmatpush1.msra.mxu0 %v51
  %193 = vmatprep.subr.mxu0 0.0
  %194 = vmatpush1.msra.mxu0 %v50
  %195 = vmatprep.subr.mxu0 0.0
  %196 = vmatpush1.msra.mxu0 %v49
  %197 = vmatprep.subr.mxu0 0.0
  %198 = vmatpush1.msra.mxu0 %v48
  %199 = vmatprep.subr.mxu0 0.0
  %200 = vmatpush1.msra.mxu0 %v47
  %201 = vmatprep.subr.mxu0 0.0
  %202 = vmatpush1.msra.mxu0 %v46
  %203 = vmatprep.subr.mxu0 0.0
  %204 = vmatpush1.msra.mxu0 %v45
  %205 = vmatprep.subr.mxu0 0.0
  %206 = vmatpush1.msra.mxu0 %v44
  %207 = vmatprep.subr.mxu0 0.0
  %208 = vmatpush1.msra.mxu0 %v43
  %209 = vmatprep.subr.mxu0 0.0
  %210 = vmatpush1.msra.mxu0 %v42
  %211 = vmatprep.subr.mxu0 0.0
  %212 = vmatpush2.msra.mxu0 %v73
  %213 = vmatprep.subr.mxu0 0.0
  %214 = vmatpush2.msra.mxu0 %v72
  %215 = vmatprep.subr.mxu0 0.0
  %216 = vmatpush2.msra.mxu0 %v71
  %217 = vmatprep.subr.mxu0 0.0
  %218 = vmatpush2.msra.mxu0 %v70
  %219 = vmatprep.subr.mxu0 0.0
  %220 = vmatpush2.msra.mxu0 %v69
  %221 = vmatprep.subr.mxu0 0.0
  %222 = vmatpush2.msra.mxu0 %v68
  %223 = vmatprep.subr.mxu0 0.0
  %224 = vmatpush2.msra.mxu0 %v67
  %225 = vmatprep.subr.mxu0 0.0
  %226 = vmatpush2.msra.mxu0 %v66
  %227 = vmatprep.subr.mxu0 0.0
  %228 = vmatpush2.msra.mxu0 %v65
  %229 = vmatprep.subr.mxu0 0.0
  %230 = vmatpush2.msra.mxu0 %v64
  %231 = vmatprep.subr.mxu0 0.0
  %232 = vmatpush2.msra.mxu0 %v63
  %233 = vmatprep.subr.mxu0 0.0
  %234 = vmatpush2.msra.mxu0 %v62
  %235 = vmatprep.subr.mxu0 0.0
  %236 = vmatpush2.msra.mxu0 %v61
  %237 = vmatprep.subr.mxu0 0.0
  %238 = vmatpush2.msra.mxu0 %v60
  %239 = vmatprep.subr.mxu0 0.0
  %240 = vmatpush2.msra.mxu0 %v59
  %241 = vmatprep.subr.mxu0 0.0
  %242 = vmatpush2.msra.mxu0 %v58
  %243 = vmatprep.mubr.f32.mxu0 %v15
  %244 = vmatmul.mubr.f32.gmra.mxu0 %v14
  %v245 = vpop.f32.mrf.mxu0
  %v246 = vadd.f32 %v149, %v245
  %v247 = vpop.f32.mrf.mxu0
  %248 = vmatprep.mubr.f32.mxu0 %v22
  %249 = vmatmul.mubr.f32.gmra.mxu0 %v21
  %v250 = vpop.f32.mrf.mxu0
  %v251 = vadd.f32 %v154, %v250
  %v252 = vpop.f32.mrf.mxu0
  %253 = vmatprep.mubr.f32.mxu0 %v29
  %254 = vmatmul.mubr.f32.gmra.mxu0 %v28
  %v255 = vpop.f32.mrf.mxu0
  %v256 = vadd.f32 %v159, %v255
  %v257 = vpop.f32.mrf.mxu0
  %258 = vmatprep.mubr.f32.mxu0 %v36
  %259 = vmatmul.mubr.f32.gmra.mxu0 %v35
  %v260 = vpop.f32.mrf.mxu0
  %v261 = vadd.f32 %v164, %v260
  %v262 = vpop.f32.mrf.mxu0
  %263 = vdwg.mxu0
  %264 = vmatprep.subr.mxu0 0.0
  %265 = vmatpush1.msra.mxu0 %v89
  %266 = vmatprep.subr.mxu0 0.0
  %267 = vmatpush1.msra.mxu0 %v88
  %268 = vmatprep.subr.mxu0 0.0
  %269 = vmatpush1.msra.mxu0 %v87
  %270 = vmatprep.subr.mxu0 0.0
  %271 = vmatpush1.msra.mxu0 %v86
  %272 = vmatprep.subr.mxu0 0.0
  %273 = vmatpush1.msra.mxu0 %v85
  %274 = vmatprep.subr.mxu0 0.0
  %275 = vmatpush1.msra.mxu0 %v84
  %276 = vmatprep.subr.mxu0 0.0
  %277 = vmatpush1.msra.mxu0 %v83
  %278 = vmatprep.subr.mxu0 0.0
  %279 = vmatpush1.msra.mxu0 %v82
  %280 = vmatprep.subr.mxu0 0.0
  %281 = vmatpush1.msra.mxu0 %v81
  %282 = vmatprep.subr.mxu0 0.0
  %283 = vmatpush1.msra.mxu0 %v80
  %284 = vmatprep.subr.mxu0 0.0
  %285 = vmatpush1.msra.mxu0 %v79
  %286 = vmatprep.subr.mxu0 0.0
  %287 = vmatpush1.msra.mxu0 %v78
  %288 = vmatprep.subr.mxu0 0.0
  %289 = vmatpush1.msra.mxu0 %v77
  %290 = vmatprep.subr.mxu0 0.0
  %291 = vmatpush1.msra.mxu0 %v76
  %292 = vmatprep.subr.mxu0 0.0
  %293 = vmatpush1.msra.mxu0 %v75
  %294 = vmatprep.subr.mxu0 0.0
  %295 = vmatpush1.msra.mxu0 %v74
  %296 = vmatprep.subr.mxu0 0.0
  %297 = vmatpush2.msra.mxu0 %v105
  %298 = vmatprep.subr.mxu0 0.0
  %299 = vmatpush2.msra.mxu0 %v104
  %300 = vmatprep.subr.mxu0 0.0
  %301 = vmatpush2.msra.mxu0 %v103
  %302 = vmatprep.subr.mxu0 0.0
  %303 = vmatpush2.msra.mxu0 %v102
  %304 = vmatprep.subr.mxu0 0.0
  %305 = vmatpush2.msra.mxu0 %v101
  %306 = vmatprep.subr.mxu0 0.0
  %307 = vmatpush2.msra.mxu0 %v100
  %308 = vmatprep.subr.mxu0 0.0
  %309 = vmatpush2.msra.mxu0 %v99
  %310 = vmatprep.subr.mxu0 0.0
  %311 = vmatpush2.msra.mxu0 %v98
  %312 = vmatprep.subr.mxu0 0.0
  %313 = vmatpush2.msra.mxu0 %v97
  %314 = vmatprep.subr.mxu0 0.0
  %315 = vmatpush2.msra.mxu0 %v96
  %316 = vmatprep.subr.mxu0 0.0
  %317 = vmatpush2.msra.mxu0 %v95
  %318 = vmatprep.subr.mxu0 0.0
  %319 = vmatpush2.msra.mxu0 %v94
  %320 = vmatprep.subr.mxu0 0.0
  %321 = vmatpush2.msra.mxu0 %v93
  %322 = vmatprep.subr.mxu0 0.0
  %323 = vmatpush2.msra.mxu0 %v92
  %324 = vmatprep.subr.mxu0 0.0
  %325 = vmatpush2.msra.mxu0 %v91
  %326 = vmatprep.subr.mxu0 0.0
  %327 = vmatpush2.msra.mxu0 %v90
  %328 = vmatprep.mubr.f32.mxu0 %v17
  %329 = vmatmul.mubr.f32.gmra.mxu0 %v16
  %v330 = vpop.f32.mrf.mxu0
  %v331 = vadd.f32 %v246, %v330
  %v332 = vpop.f32.mrf.mxu0
  %333 = vmatprep.mubr.f32.mxu0 %v24
  %334 = vmatmul.mubr.f32.gmra.mxu0 %v23
  %v335 = vpop.f32.mrf.mxu0
  %v336 = vadd.f32 %v251, %v335
  %v337 = vpop.f32.mrf.mxu0
  %338 = vmatprep.mubr.f32.mxu0 %v31
  %339 = vmatmul.mubr.f32.gmra.mxu0 %v30
  %v340 = vpop.f32.mrf.mxu0
  %v341 = vadd.f32 %v256, %v340
  %v342 = vpop.f32.mrf.mxu0
  %343 = vmatprep.mubr.f32.mxu0 %v38
  %344 = vmatmul.mubr.f32.gmra.mxu0 %v37
  %v345 = vpop.f32.mrf.mxu0
  %v346 = vadd.f32 %v261, %v345
  %v347 = vpop.f32.mrf.mxu0
  %348 = vdwg.mxu0
  %349 = vmatprep.subr.mxu0 0.0
  %350 = vmatpush1.msra.mxu0 %v121
  %351 = vmatprep.subr.mxu0 0.0
  %352 = vmatpush1.msra.mxu0 %v120
  %353 = vmatprep.subr.mxu0 0.0
  %354 = vmatpush1.msra.mxu0 %v119
  %355 = vmatprep.subr.mxu0 0.0
  %356 = vmatpush1.msra.mxu0 %v118
  %357 = vmatprep.subr.mxu0 0.0
  %358 = vmatpush1.msra.mxu0 %v117
  %359 = vmatprep.subr.mxu0 0.0
  %360 = vmatpush1.msra.mxu0 %v116
  %361 = vmatprep.subr.mxu0 0.0
  %362 = vmatpush1.msra.mxu0 %v115
  %363 = vmatprep.subr.mxu0 0.0
  %364 = vmatpush1.msra.mxu0 %v114
  %365 = vmatprep.subr.mxu0 0.0
  %366 = vmatpush1.msra.mxu0 %v113
  %367 = vmatprep.subr.mxu0 0.0
  %368 = vmatpush1.msra.mxu0 %v112
  %369 = vmatprep.subr.mxu0 0.0
  %370 = vmatpush1.msra.mxu0 %v111
  %371 = vmatprep.subr.mxu0 0.0
  %372 = vmatpush1.msra.mxu0 %v110
  %373 = vmatprep.subr.mxu0 0.0
  %374 = vmatpush1.msra.mxu0 %v109
  %375 = vmatprep.subr.mxu0 0.0
  %376 = vmatpush1.msra.mxu0 %v108
  %377 = vmatprep.subr.mxu0 0.0
  %378 = vmatpush1.msra.mxu0 %v107
  %379 = vmatprep.subr.mxu0 0.0
  %380 = vmatpush1.msra.mxu0 %v106
  %381 = vmatprep.subr.mxu0 0.0
  %382 = vmatpush2.msra.mxu0 %v137
  %383 = vmatprep.subr.mxu0 0.0
  %384 = vmatpush2.msra.mxu0 %v136
  %385 = vmatprep.subr.mxu0 0.0
  %386 = vmatpush2.msra.mxu0 %v135
  %387 = vmatprep.subr.mxu0 0.0
  %388 = vmatpush2.msra.mxu0 %v134
  %389 = vmatprep.subr.mxu0 0.0
  %390 = vmatpush2.msra.mxu0 %v133
  %391 = vmatprep.subr.mxu0 0.0
  %392 = vmatpush2.msra.mxu0 %v132
  %393 = vmatprep.subr.mxu0 0.0
  %394 = vmatpush2.msra.mxu0 %v131
  %395 = vmatprep.subr.mxu0 0.0
  %396 = vmatpush2.msra.mxu0 %v130
  %397 = vmatprep.subr.mxu0 0.0
  %398 = vmatpush2.msra.mxu0 %v129
  %399 = vmatprep.subr.mxu0 0.0
  %400 = vmatpush2.msra.mxu0 %v128
  %401 = vmatprep.subr.mxu0 0.0
  %402 = vmatpush2.msra.mxu0 %v127
  %403 = vmatprep.subr.mxu0 0.0
  %404 = vmatpush2.msra.mxu0 %v126
  %405 = vmatprep.subr.mxu0 0.0
  %406 = vmatpush2.msra.mxu0 %v125
  %407 = vmatprep.subr.mxu0 0.0
  %408 = vmatpush2.msra.mxu0 %v124
  %409 = vmatprep.subr.mxu0 0.0
  %410 = vmatpush2.msra.mxu0 %v123
  %411 = vmatprep.subr.mxu0 0.0
  %412 = vmatpush2.msra.mxu0 %v122
  %413 = vmatprep.mubr.f32.mxu0 %v19
  %414 = vmatmul.mubr.f32.gmra.mxu0 %v18
  %v415 = vpop.f32.mrf.mxu0
  %v416 = vadd.f32 %v331, %v415
  %v417 = vpop.f32.mrf.mxu0
  %418 = vmatprep.mubr.f32.mxu0 %v26
  %419 = vmatmul.mubr.f32.gmra.mxu0 %v25
  %v420 = vpop.f32.mrf.mxu0
  %v421 = vadd.f32 %v336, %v420
  %v422 = vpop.f32.mrf.mxu0
  %423 = vmatprep.mubr.f32.mxu0 %v33
  %424 = vmatmul.mubr.f32.gmra.mxu0 %v32
  %v425 = vpop.f32.mrf.mxu0
  %v426 = vadd.f32 %v341, %v425
  %v427 = vpop.f32.mrf.mxu0
  %428 = vmatprep.mubr.f32.mxu0 %v40
  %429 = vmatmul.mubr.f32.gmra.mxu0 %v39
  %v430 = vpop.f32.mrf.mxu0
  %v431 = vadd.f32 %v346, %v430
  %v432 = vpop.f32.mrf.mxu0
  %433 = vdwg.mxu0
  %434 = vmatprep.subr.mxu0 0.0
  %435 = vmatpush1.msra.mxu0 0.0
  %436 = vmatprep.subr.mxu0 0.0
  %437 = vmatpush1.msra.mxu0 0.0
  %438 = vmatprep.subr.mxu0 0.0
  %439 = vmatpush1.msra.mxu0 0.0
  %440 = vmatprep.subr.mxu0 0.0
  %441 = vmatpush1.msra.mxu0 0.0
  %442 = vmatprep.subr.mxu0 0.0
  %443 = vmatpush1.msra.mxu0 0.0
  %444 = vmatprep.subr.mxu0 0.0
  %445 = vmatpush1.msra.mxu0 0.0
  %446 = vmatprep.subr.mxu0 0.0
  %447 = vmatpush1.msra.mxu0 0.0
  %448 = vmatprep.subr.mxu0 0.0
  %449 = vmatpush1.msra.mxu0 0.0
  %450 = vmatprep.subr.mxu0 0.0
  %451 = vmatpush1.msra.mxu0 0.0
  %452 = vmatprep.subr.mxu0 0.0
  %453 = vmatpush1.msra.mxu0 0.0
  %454 = vmatprep.subr.mxu0 0.0
  %455 = vmatpush1.msra.mxu0 0.0
  %456 = vmatprep.subr.mxu0 0.0
  %457 = vmatpush1.msra.mxu0 0.0
  %458 = vmatprep.subr.mxu0 0.0
  %459 = vmatpush1.msra.mxu0 %v141
  %460 = vmatprep.subr.mxu0 0.0
  %461 = vmatpush1.msra.mxu0 %v140
  %462 = vmatprep.subr.mxu0 0.0
  %463 = vmatpush1.msra.mxu0 %v139
  %464 = vmatprep.subr.mxu0 0.0
  %465 = vmatpush1.msra.mxu0 %v138
  %466 = vmatprep.subr.mxu0 0.0
  %467 = vmatpush2.msra.mxu0 0.0
  %468 = vmatprep.subr.mxu0 0.0
  %469 = vmatpush2.msra.mxu0 0.0
  %470 = vmatprep.subr.mxu0 0.0
  %471 = vmatpush2.msra.mxu0 0.0
  %472 = vmatprep.subr.mxu0 0.0
  %473 = vmatpush2.msra.mxu0 0.0
  %474 = vmatprep.subr.mxu0 0.0
  %475 = vmatpush2.msra.mxu0 0.0
  %476 = vmatprep.subr.mxu0 0.0
  %477 = vmatpush2.msra.mxu0 0.0
  %478 = vmatprep.subr.mxu0 0.0
  %479 = vmatpush2.msra.mxu0 0.0
  %480 = vmatprep.subr.mxu0 0.0
  %481 = vmatpush2.msra.mxu0 0.0
  %482 = vmatprep.subr.mxu0 0.0
  %483 = vmatpush2.msra.mxu0 0.0
  %484 = vmatprep.subr.mxu0 0.0
  %485 = vmatpush2.msra.mxu0 0.0
  %486 = vmatprep.subr.mxu0 0.0
  %487 = vmatpush2.msra.mxu0 0.0
  %488 = vmatprep.subr.mxu0 0.0
  %489 = vmatpush2.msra.mxu0 0.0
  %490 = vmatprep.subr.mxu0 0.0
  %491 = vmatpush2.msra.mxu0 0.0
  %492 = vmatprep.subr.mxu0 0.0
  %493 = vmatpush2.msra.mxu0 0.0
  %494 = vmatprep.subr.mxu0 0.0
  %495 = vmatpush2.msra.mxu0 0.0
  %496 = vmatprep.subr.mxu0 0.0
  %497 = vmatpush2.msra.mxu0 0.0
  %498 = vmatprep.mubr.f32.mxu0 0.0
  %499 = vmatmul.mubr.f32.gmra.mxu0 %v168
  %v500 = vpop.f32.mrf.mxu0
  %v501 = vadd.f32 %v416, %v500
  %v502 = vpop.f32.mrf.mxu0
  %503 = vmatprep.mubr.f32.mxu0 0.0
  %504 = vmatmul.mubr.f32.gmra.mxu0 %v171
  %v505 = vpop.f32.mrf.mxu0
  %v506 = vadd.f32 %v421, %v505
  %v507 = vpop.f32.mrf.mxu0
  %508 = vmatprep.mubr.f32.mxu0 0.0
  %509 = vmatmul.mubr.f32.gmra.mxu0 %v174
  %v510 = vpop.f32.mrf.mxu0
  %v511 = vadd.f32 %v426, %v510
  %v512 = vpop.f32.mrf.mxu0
  %513 = vmatprep.mubr.f32.mxu0 0.0
  %514 = vmatmul.mubr.f32.gmra.mxu0 %v177
  %v515 = vpop.f32.mrf.mxu0
  %v516 = vadd.f32 %v431, %v515
  %v517 = vpop.f32.mrf.mxu0
  %518 = vdwg.mxu0
  %v519 = vmax.f32 %v501, 0.0
  %v520 = vmax.f32 %v506, 0.0
  %v521 = vmax.f32 %v511, 0.0
  %v522 = vmax.f32 %v516, 0.0
  %vm523 = vcmask 801792
  %524 = vst.msk [vmem:[%s3] sm:$0xff] %vm523, %v519
  %525 = vst.msk [vmem:[%s3 + $0x8] sm:$0xff] %vm523, %v520
  %526 = vst.msk [vmem:[%s3 + $0x10] sm:$0xff] %vm523, %v521
  %527 = vst.msk [vmem:[%s3 + $0x18] sm:$0xff] %vm523, %v522
  // Predicated region
  $region14: #{critic_forward.5} parent=0 // pred_check
    _
  $region15: #{critic_forward.5} parent=0 // pred_check_branch
    %529 = sbr.rel (0) target = $region17
  $region16: #{critic_forward.5} parent=0 // pred_region
    _
  $region17: #{critic_forward.5} parent=0 // pred_fallthru
    _
  // Predicated region
  $region18: #{critic_forward.5} parent=0 // pred_check
    _
  $region19: #{critic_forward.5} parent=0 // pred_check_branch
    %531 = sbr.rel (0) target = $region21
  $region20: #{critic_forward.5} parent=0 // pred_region
    _
  $region21: #{critic_forward.5} parent=0 // pred_fallthru
    _

// kernel: critic_forward.6
$region0: #{critic_forward.6}
  #allocation0 [shape = 'u32[]', space=smem, size = 0x4, offset = 0x4, fixed_abs, tag = 'smem constant byte address 0x4 - core index']
  #allocation1 [shape = 'u32[144,128]{1,0:T(1,128)}', space=vmem, size = 0x12000, scoped, tag = 'internal scratch']
  %s0 = inlined_call_operand.vmem [shape: f32[32,800], index: 0, kind: input, shape index: {}]
  %s1 = inlined_call_operand.vmem [shape: f32[800,8], index: 1, kind: input, shape index: {}]
  %s2 = inlined_call_operand.vmem [shape: f32[32,1], index: 2, kind: input, shape index: {}]
  %s3 = inlined_call_operand.vmem [shape: f32[32,8], index: 3, kind: output, shape index: {}]
  %s4 = sld [smem:[#allocation0]]
  $region22: #{critic_forward.6} parent=0
    _
  %s6 = ssub.s32 1, %s4
  %s7 = scalar_select 0, %s6, %s4
  // Predicated region
  $region2: #{critic_forward.6} parent=0 // pred_check
    _
  $region3: #{critic_forward.6} parent=0 // pred_check_branch
    %9 = sbr.rel (0) target = $region5
  $region4: #{critic_forward.6} parent=0 // pred_region
    _
  $region5: #{critic_forward.6} parent=0 // pred_fallthru
    _
  // Predicated region
  $region6: #{critic_forward.6} parent=0 // pred_check
    _
  $region7: #{critic_forward.6} parent=0 // pred_check_branch
    %11 = sbr.rel (0) target = $region9
  $region8: #{critic_forward.6} parent=0 // pred_region
    _
  $region9: #{critic_forward.6} parent=0 // pred_fallthru
    _
  // Predicated region
  $region10: #{critic_forward.6} parent=0 // pred_check
    _
  $region11: #{critic_forward.6} parent=0 // pred_check_branch
    %13 = sbr.rel (0) target = $region13
  $region12: #{critic_forward.6} parent=0 // pred_region
    _
  $region13: #{critic_forward.6} parent=0 // pred_fallthru
    _
  %v14 = vld [vmem:[%s0] sm:$0xff]
  %v15 = vld [vmem:[%s0 + $0x8] sm:$0xff]
  %v16 = vld [vmem:[%s0 + $0x10] sm:$0xff]
  %v17 = vld [vmem:[%s0 + $0x18] sm:$0xff]
  %v18 = vld [vmem:[%s0 + $0x20] sm:$0xff]
  %v19 = vld [vmem:[%s0 + $0x28] sm:$0xff]
  %v20 = vld [vmem:[%s0 + $0x30] sm:$0xff]
  %v21 = vld [vmem:[%s0 + $0x38] sm:$0xff]
  %v22 = vld [vmem:[%s0 + $0x40] sm:$0xff]
  %v23 = vld [vmem:[%s0 + $0x48] sm:$0xff]
  %v24 = vld [vmem:[%s0 + $0x50] sm:$0xff]
  %v25 = vld [vmem:[%s0 + $0x58] sm:$0xff]
  %v26 = vld [vmem:[%s0 + $0x60] sm:$0xff]
  %v27 = vld [vmem:[%s0 + $0x68] sm:$0xff]
  %v28 = vld [vmem:[%s0 + $0x70] sm:$0xff]
  %v29 = vld [vmem:[%s0 + $0x78] sm:$0xff]
  %v30 = vld [vmem:[%s0 + $0x80] sm:$0xff]
  %v31 = vld [vmem:[%s0 + $0x88] sm:$0xff]
  %v32 = vld [vmem:[%s0 + $0x90] sm:$0xff]
  %v33 = vld [vmem:[%s0 + $0x98] sm:$0xff]
  %v34 = vld [vmem:[%s0 + $0xa0] sm:$0xff]
  %v35 = vld [vmem:[%s0 + $0xa8] sm:$0xff]
  %v36 = vld [vmem:[%s0 + $0xb0] sm:$0xff]
  %v37 = vld [vmem:[%s0 + $0xb8] sm:$0xff]
  %v38 = vld [vmem:[%s0 + $0xc0] sm:$0xff]
  %v39 = vld [vmem:[%s0 + $0xc8] sm:$0xff]
  %v40 = vld [vmem:[%s0 + $0xd0] sm:$0xff]
  %v41 = vld [vmem:[%s0 + $0xd8] sm:$0xff]
  %v42 = vld [vmem:[%s1] sm:$0xff]
  %v43 = vld [vmem:[%s1 + $0x8] sm:$0xff]
  %v44 = vld [vmem:[%s1 + $0x10] sm:$0xff]
  %v45 = vld [vmem:[%s1 + $0x18] sm:$0xff]
  %v46 = vld [vmem:[%s1 + $0x20] sm:$0xff]
  %v47 = vld [vmem:[%s1 + $0x28] sm:$0xff]
  %v48 = vld [vmem:[%s1 + $0x30] sm:$0xff]
  %v49 = vld [vmem:[%s1 + $0x38] sm:$0xff]
  %v50 = vld [vmem:[%s1 + $0x40] sm:$0xff]
  %v51 = vld [vmem:[%s1 + $0x48] sm:$0xff]
  %v52 = vld [vmem:[%s1 + $0x50] sm:$0xff]
  %v53 = vld [vmem:[%s1 + $0x58] sm:$0xff]
  %v54 = vld [vmem:[%s1 + $0x60] sm:$0xff]
  %v55 = vld [vmem:[%s1 + $0x68] sm:$0xff]
  %v56 = vld [vmem:[%s1 + $0x70] sm:$0xff]
  %v57 = vld [vmem:[%s1 + $0x78] sm:$0xff]
  %v58 = vld [vmem:[%s1 + $0x80] sm:$0xff]
  %v59 = vld [vmem:[%s1 + $0x88] sm:$0xff]
  %v60 = vld [vmem:[%s1 + $0x90] sm:$0xff]
  %v61 = vld [vmem:[%s1 + $0x98] sm:$0xff]
  %v62 = vld [vmem:[%s1 + $0xa0] sm:$0xff]
  %v63 = vld [vmem:[%s1 + $0xa8] sm:$0xff]
  %v64 = vld [vmem:[%s1 + $0xb0] sm:$0xff]
  %v65 = vld [vmem:[%s1 + $0xb8] sm:$0xff]
  %v66 = vld [vmem:[%s1 + $0xc0] sm:$0xff]
  %v67 = vld [vmem:[%s1 + $0xc8] sm:$0xff]
  %v68 = vld [vmem:[%s1 + $0xd0] sm:$0xff]
  %v69 = vld [vmem:[%s1 + $0xd8] sm:$0xff]
  %v70 = vld [vmem:[%s1 + $0xe0] sm:$0xff]
  %v71 = vld [vmem:[%s1 + $0xe8] sm:$0xff]
  %v72 = vld [vmem:[%s1 + $0xf0] sm:$0xff]
  %v73 = vld [vmem:[%s1 + $0xf8] sm:$0xff]
  %v74 = vld [vmem:[%s1 + $0x100] sm:$0xff]
  %v75 = vld [vmem:[%s1 + $0x108] sm:$0xff]
  %v76 = vld [vmem:[%s1 + $0x110] sm:$0xff]
  %v77 = vld [vmem:[%s1 + $0x118] sm:$0xff]
  %v78 = vld [vmem:[%s1 + $0x120] sm:$0xff]
  %v79 = vld [vmem:[%s1 + $0x128] sm:$0xff]
  %v80 = vld [vmem:[%s1 + $0x130] sm:$0xff]
  %v81 = vld [vmem:[%s1 + $0x138] sm:$0xff]
  %v82 = vld [vmem:[%s1 + $0x140] sm:$0xff]
  %v83 = vld [vmem:[%s1 + $0x148] sm:$0xff]
  %v84 = vld [vmem:[%s1 + $0x150] sm:$0xff]
  %v85 = vld [vmem:[%s1 + $0x158] sm:$0xff]
  %v86 = vld [vmem:[%s1 + $0x160] sm:$0xff]
  %v87 = vld [vmem:[%s1 + $0x168] sm:$0xff]
  %v88 = vld [vmem:[%s1 + $0x170] sm:$0xff]
  %v89 = vld [vmem:[%s1 + $0x178] sm:$0xff]
  %v90 = vld [vmem:[%s1 + $0x180] sm:$0xff]
  %v91 = vld [vmem:[%s1 + $0x188] sm:$0xff]
  %v92 = vld [vmem:[%s1 + $0x190] sm:$0xff]
  %v93 = vld [vmem:[%s1 + $0x198] sm:$0xff]
  %v94 = vld [vmem:[%s1 + $0x1a0] sm:$0xff]
  %v95 = vld [vmem:[%s1 + $0x1a8] sm:$0xff]
  %v96 = vld [vmem:[%s1 + $0x1b0] sm:$0xff]
  %v97 = vld [vmem:[%s1 + $0x1b8] sm:$0xff]
  %v98 = vld [vmem:[%s1 + $0x1c0] sm:$0xff]
  %v99 = vld [vmem:[%s1 + $0x1c8] sm:$0xff]
  %v100 = vld [vmem:[%s1 + $0x1d0] sm:$0xff]
  %v101 = vld [vmem:[%s1 + $0x1d8] sm:$0xff]
  %v102 = vld [vmem:[%s1 + $0x1e0] sm:$0xff]
  %v103 = vld [vmem:[%s1 + $0x1e8] sm:$0xff]
  %v104 = vld [vmem:[%s1 + $0x1f0] sm:$0xff]
  %v105 = vld [vmem:[%s1 + $0x1f8] sm:$0xff]
  %v106 = vld [vmem:[%s1 + $0x200] sm:$0xff]
  %v107 = vld [vmem:[%s1 + $0x208] sm:$0xff]
  %v108 = vld [vmem:[%s1 + $0x210] sm:$0xff]
  %v109 = vld [vmem:[%s1 + $0x218] sm:$0xff]
  %v110 = vld [vmem:[%s1 + $0x220] sm:$0xff]
  %v111 = vld [vmem:[%s1 + $0x228] sm:$0xff]
  %v112 = vld [vmem:[%s1 + $0x230] sm:$0xff]
  %v113 = vld [vmem:[%s1 + $0x238] sm:$0xff]
  %v114 = vld [vmem:[%s1 + $0x240] sm:$0xff]
  %v115 = vld [vmem:[%s1 + $0x248] sm:$0xff]
  %v116 = vld [vmem:[%s1 + $0x250] sm:$0xff]
  %v117 = vld [vmem:[%s1 + $0x258] sm:$0xff]
  %v118 = vld [vmem:[%s1 + $0x260] sm:$0xff]
  %v119 = vld [vmem:[%s1 + $0x268] sm:$0xff]
  %v120 = vld [vmem:[%s1 + $0x270] sm:$0xff]
  %v121 = vld [vmem:[%s1 + $0x278] sm:$0xff]
  %v122 = vld [vmem:[%s1 + $0x280] sm:$0xff]
  %v123 = vld [vmem:[%s1 + $0x288] sm:$0xff]
  %v124 = vld [vmem:[%s1 + $0x290] sm:$0xff]
  %v125 = vld [vmem:[%s1 + $0x298] sm:$0xff]
  %v126 = vld [vmem:[%s1 + $0x2a0] sm:$0xff]
  %v127 = vld [vmem:[%s1 + $0x2a8] sm:$0xff]
  %v128 = vld [vmem:[%s1 + $0x2b0] sm:$0xff]
  %v129 = vld [vmem:[%s1 + $0x2b8] sm:$0xff]
  %v130 = vld [vmem:[%s1 + $0x2c0] sm:$0xff]
  %v131 = vld [vmem:[%s1 + $0x2c8] sm:$0xff]
  %v132 = vld [vmem:[%s1 + $0x2d0] sm:$0xff]
  %v133 = vld [vmem:[%s1 + $0x2d8] sm:$0xff]
  %v134 = vld [vmem:[%s1 + $0x2e0] sm:$0xff]
  %v135 = vld [vmem:[%s1 + $0x2e8] sm:$0xff]
  %v136 = vld [vmem:[%s1 + $0x2f0] sm:$0xff]
  %v137 = vld [vmem:[%s1 + $0x2f8] sm:$0xff]
  %v138 = vld [vmem:[%s1 + $0x300] sm:$0xff]
  %v139 = vld [vmem:[%s1 + $0x308] sm:$0xff]
  %v140 = vld [vmem:[%s1 + $0x310] sm:$0xff]
  %v141 = vld [vmem:[%s1 + $0x318] sm:$0xff]
  %v142 = vld [vmem:[%s2] sm:$0xff]
  %v143 = vld [vmem:[%s2 + $0x8] sm:$0xff]
  %v144 = vld [vmem:[%s2 + $0x10] sm:$0xff]
  %v145 = vld [vmem:[%s2 + $0x18] sm:$0xff]
  %147 = vset.pattern.permute.xlu0 0
  %148 = vperm.xlu0 %147, %v142
  %v149 = vpop.permute.xlu0 %148
  %152 = vset.pattern.permute.xlu0 0
  %153 = vperm.xlu0 %152, %v143
  %v154 = vpop.permute.xlu0 %153
  %157 = vset.pattern.permute.xlu0 0
  %158 = vperm.xlu0 %157, %v144
  %v159 = vpop.permute.xlu0 %158
  %162 = vset.pattern.permute.xlu0 0
  %163 = vperm.xlu0 %162, %v145
  %v164 = vpop.permute.xlu0 %163
  %vm166 = vcmask 261120
  %v168 = vsel %vm166, %v20, 0
  %v171 = vsel %vm166, %v27, 0
  %v174 = vsel %vm166, %v34, 0
  %v177 = vsel %vm166, %v41, 0
  %179 = vmatprep.subr.mxu0 0.0
  %180 = vmatpush1.msra.mxu0 %v57
  %181 = vmatprep.subr.mxu0 0.0
  %182 = vmatpush1.msra.mxu0 %v56
  %183 = vmatprep.subr.mxu0 0.0
  %184 = vmatpush1.msra.mxu0 %v55
  %185 = vmatprep.subr.mxu0 0.0
  %186 = vmatpush1.msra.mxu0 %v54
  %187 = vmatprep.subr.mxu0 0.0
  %188 = vmatpush1.msra.mxu0 %v53
  %189 = vmatprep.subr.mxu0 0.0
  %190 = vmatpush1.msra.mxu0 %v52
  %191 = vmatprep.subr.mxu0 0.0
  %192 = vmatpush1.msra.mxu0 %v51
  %193 = vmatprep.subr.mxu0 0.0
  %194 = vmatpush1.msra.mxu0 %v50
  %195 = vmatprep.subr.mxu0 0.0
  %196 = vmatpush1.msra.mxu0 %v49
  %197 = vmatprep.subr.mxu0 0.0
  %198 = vmatpush1.msra.mxu0 %v48
  %199 = vmatprep.subr.mxu0 0.0
  %200 = vmatpush1.msra.mxu0 %v47
  %201 = vmatprep.subr.mxu0 0.0
  %202 = vmatpush1.msra.mxu0 %v46
  %203 = vmatprep.subr.mxu0 0.0
  %204 = vmatpush1.msra.mxu0 %v45
  %205 = vmatprep.subr.mxu0 0.0
  %206 = vmatpush1.msra.mxu0 %v44
  %207 = vmatprep.subr.mxu0 0.0
  %208 = vmatpush1.msra.mxu0 %v43
  %209 = vmatprep.subr.mxu0 0.0
  %210 = vmatpush1.msra.mxu0 %v42
  %211 = vmatprep.subr.mxu0 0.0
  %212 = vmatpush2.msra.mxu0 %v73
  %213 = vmatprep.subr.mxu0 0.0
  %214 = vmatpush2.msra.mxu0 %v72
  %215 = vmatprep.subr.mxu0 0.0
  %216 = vmatpush2.msra.mxu0 %v71
  %217 = vmatprep.subr.mxu0 0.0
  %218 = vmatpush2.msra.mxu0 %v70
  %219 = vmatprep.subr.mxu0 0.0
  %220 = vmatpush2.msra.mxu0 %v69
  %221 = vmatprep.subr.mxu0 0.0
  %222 = vmatpush2.msra.mxu0 %v68
  %223 = vmatprep.subr.mxu0 0.0
  %224 = vmatpush2.msra.mxu0 %v67
  %225 = vmatprep.subr.mxu0 0.0
  %226 = vmatpush2.msra.mxu0 %v66
  %227 = vmatprep.subr.mxu0 0.0
  %228 = vmatpush2.msra.mxu0 %v65
  %229 = vmatprep.subr.mxu0 0.0
  %230 = vmatpush2.msra.mxu0 %v64
  %231 = vmatprep.subr.mxu0 0.0
  %232 = vmatpush2.msra.mxu0 %v63
  %233 = vmatprep.subr.mxu0 0.0
  %234 = vmatpush2.msra.mxu0 %v62
  %235 = vmatprep.subr.mxu0 0.0
  %236 = vmatpush2.msra.mxu0 %v61
  %237 = vmatprep.subr.mxu0 0.0
  %238 = vmatpush2.msra.mxu0 %v60
  %239 = vmatprep.subr.mxu0 0.0
  %240 = vmatpush2.msra.mxu0 %v59
  %241 = vmatprep.subr.mxu0 0.0
  %242 = vmatpush2.msra.mxu0 %v58
  %243 = vmatprep.mubr.f32.mxu0 %v15
  %244 = vmatmul.mubr.f32.gmra.mxu0 %v14
  %v245 = vpop.f32.mrf.mxu0
  %v246 = vadd.f32 %v149, %v245
  %v247 = vpop.f32.mrf.mxu0
  %248 = vmatprep.mubr.f32.mxu0 %v22
  %249 = vmatmul.mubr.f32.gmra.mxu0 %v21
  %v250 = vpop.f32.mrf.mxu0
  %v251 = vadd.f32 %v154, %v250
  %v252 = vpop.f32.mrf.mxu0
  %253 = vmatprep.mubr.f32.mxu0 %v29
  %254 = vmatmul.mubr.f32.gmra.mxu0 %v28
  %v255 = vpop.f32.mrf.mxu0
  %v256 = vadd.f32 %v159, %v255
  %v257 = vpop.f32.mrf.mxu0
  %258 = vmatprep.mubr.f32.mxu0 %v36
  %259 = vmatmul.mubr.f32.gmra.mxu0 %v35
  %v260 = vpop.f32.mrf.mxu0
  %v261 = vadd.f32 %v164, %v260
  %v262 = vpop.f32.mrf.mxu0
  %263 = vdwg.mxu0
  %264 = vmatprep.subr.mxu0 0.0
  %265 = vmatpush1.msra.mxu0 %v89
  %266 = vmatprep.subr.mxu0 0.0
  %267 = vmatpush1.msra.mxu0 %v88
  %268 = vmatprep.subr.mxu0 0.0
  %269 = vmatpush1.msra.mxu0 %v87
  %270 = vmatprep.subr.mxu0 0.0
  %271 = vmatpush1.msra.mxu0 %v86
  %272 = vmatprep.subr.mxu0 0.0
  %273 = vmatpush1.msra.mxu0 %v85
  %274 = vmatprep.subr.mxu0 0.0
  %275 = vmatpush1.msra.mxu0 %v84
  %276 = vmatprep.subr.mxu0 0.0
  %277 = vmatpush1.msra.mxu0 %v83
  %278 = vmatprep.subr.mxu0 0.0
  %279 = vmatpush1.msra.mxu0 %v82
  %280 = vmatprep.subr.mxu0 0.0
  %281 = vmatpush1.msra.mxu0 %v81
  %282 = vmatprep.subr.mxu0 0.0
  %283 = vmatpush1.msra.mxu0 %v80
  %284 = vmatprep.subr.mxu0 0.0
  %285 = vmatpush1.msra.mxu0 %v79
  %286 = vmatprep.subr.mxu0 0.0
  %287 = vmatpush1.msra.mxu0 %v78
  %288 = vmatprep.subr.mxu0 0.0
  %289 = vmatpush1.msra.mxu0 %v77
  %290 = vmatprep.subr.mxu0 0.0
  %291 = vmatpush1.msra.mxu0 %v76
  %292 = vmatprep.subr.mxu0 0.0
  %293 = vmatpush1.msra.mxu0 %v75
  %294 = vmatprep.subr.mxu0 0.0
  %295 = vmatpush1.msra.mxu0 %v74
  %296 = vmatprep.subr.mxu0 0.0
  %297 = vmatpush2.msra.mxu0 %v105
  %298 = vmatprep.subr.mxu0 0.0
  %299 = vmatpush2.msra.mxu0 %v104
  %300 = vmatprep.subr.mxu0 0.0
  %301 = vmatpush2.msra.mxu0 %v103
  %302 = vmatprep.subr.mxu0 0.0
  %303 = vmatpush2.msra.mxu0 %v102
  %304 = vmatprep.subr.mxu0 0.0
  %305 = vmatpush2.msra.mxu0 %v101
  %306 = vmatprep.subr.mxu0 0.0
  %307 = vmatpush2.msra.mxu0 %v100
  %308 = vmatprep.subr.mxu0 0.0
  %309 = vmatpush2.msra.mxu0 %v99
  %310 = vmatprep.subr.mxu0 0.0
  %311 = vmatpush2.msra.mxu0 %v98
  %312 = vmatprep.subr.mxu0 0.0
  %313 = vmatpush2.msra.mxu0 %v97
  %314 = vmatprep.subr.mxu0 0.0
  %315 = vmatpush2.msra.mxu0 %v96
  %316 = vmatprep.subr.mxu0 0.0
  %317 = vmatpush2.msra.mxu0 %v95
  %318 = vmatprep.subr.mxu0 0.0
  %319 = vmatpush2.msra.mxu0 %v94
  %320 = vmatprep.subr.mxu0 0.0
  %321 = vmatpush2.msra.mxu0 %v93
  %322 = vmatprep.subr.mxu0 0.0
  %323 = vmatpush2.msra.mxu0 %v92
  %324 = vmatprep.subr.mxu0 0.0
  %325 = vmatpush2.msra.mxu0 %v91
  %326 = vmatprep.subr.mxu0 0.0
  %327 = vmatpush2.msra.mxu0 %v90
  %328 = vmatprep.mubr.f32.mxu0 %v17
  %329 = vmatmul.mubr.f32.gmra.mxu0 %v16
  %v330 = vpop.f32.mrf.mxu0
  %v331 = vadd.f32 %v246, %v330
  %v332 = vpop.f32.mrf.mxu0
  %333 = vmatprep.mubr.f32.mxu0 %v24
  %334 = vmatmul.mubr.f32.gmra.mxu0 %v23
  %v335 = vpop.f32.mrf.mxu0
  %v336 = vadd.f32 %v251, %v335
  %v337 = vpop.f32.mrf.mxu0
  %338 = vmatprep.mubr.f32.mxu0 %v31
  %339 = vmatmul.mubr.f32.gmra.mxu0 %v30
  %v340 = vpop.f32.mrf.mxu0
  %v341 = vadd.f32 %v256, %v340
  %v342 = vpop.f32.mrf.mxu0
  %343 = vmatprep.mubr.f32.mxu0 %v38
  %344 = vmatmul.mubr.f32.gmra.mxu0 %v37
  %v345 = vpop.f32.mrf.mxu0
  %v346 = vadd.f32 %v261, %v345
  %v347 = vpop.f32.mrf.mxu0
  %348 = vdwg.mxu0
  %349 = vmatprep.subr.mxu0 0.0
  %350 = vmatpush1.msra.mxu0 %v121
  %351 = vmatprep.subr.mxu0 0.0
  %352 = vmatpush1.msra.mxu0 %v120
  %353 = vmatprep.subr.mxu0 0.0
  %354 = vmatpush1.msra.mxu0 %v119
  %355 = vmatprep.subr.mxu0 0.0
  %356 = vmatpush1.msra.mxu0 %v118
  %357 = vmatprep.subr.mxu0 0.0
  %358 = vmatpush1.msra.mxu0 %v117
  %359 = vmatprep.subr.mxu0 0.0
  %360 = vmatpush1.msra.mxu0 %v116
  %361 = vmatprep.subr.mxu0 0.0
  %362 = vmatpush1.msra.mxu0 %v115
  %363 = vmatprep.subr.mxu0 0.0
  %364 = vmatpush1.msra.mxu0 %v114
  %365 = vmatprep.subr.mxu0 0.0
  %366 = vmatpush1.msra.mxu0 %v113
  %367 = vmatprep.subr.mxu0 0.0
  %368 = vmatpush1.msra.mxu0 %v112
  %369 = vmatprep.subr.mxu0 0.0
  %370 = vmatpush1.msra.mxu0 %v111
  %371 = vmatprep.subr.mxu0 0.0
  %372 = vmatpush1.msra.mxu0 %v110
  %373 = vmatprep.subr.mxu0 0.0
  %374 = vmatpush1.msra.mxu0 %v109
  %375 = vmatprep.subr.mxu0 0.0
  %376 = vmatpush1.msra.mxu0 %v108
  %377 = vmatprep.subr.mxu0 0.0
  %378 = vmatpush1.msra.mxu0 %v107
  %379 = vmatprep.subr.mxu0 0.0
  %380 = vmatpush1.msra.mxu0 %v106
  %381 = vmatprep.subr.mxu0 0.0
  %382 = vmatpush2.msra.mxu0 %v137
  %383 = vmatprep.subr.mxu0 0.0
  %384 = vmatpush2.msra.mxu0 %v136
  %385 = vmatprep.subr.mxu0 0.0
  %386 = vmatpush2.msra.mxu0 %v135
  %387 = vmatprep.subr.mxu0 0.0
  %388 = vmatpush2.msra.mxu0 %v134
  %389 = vmatprep.subr.mxu0 0.0
  %390 = vmatpush2.msra.mxu0 %v133
  %391 = vmatprep.subr.mxu0 0.0
  %392 = vmatpush2.msra.mxu0 %v132
  %393 = vmatprep.subr.mxu0 0.0
  %394 = vmatpush2.msra.mxu0 %v131
  %395 = vmatprep.subr.mxu0 0.0
  %396 = vmatpush2.msra.mxu0 %v130
  %397 = vmatprep.subr.mxu0 0.0
  %398 = vmatpush2.msra.mxu0 %v129
  %399 = vmatprep.subr.mxu0 0.0
  %400 = vmatpush2.msra.mxu0 %v128
  %401 = vmatprep.subr.mxu0 0.0
  %402 = vmatpush2.msra.mxu0 %v127
  %403 = vmatprep.subr.mxu0 0.0
  %404 = vmatpush2.msra.mxu0 %v126
  %405 = vmatprep.subr.mxu0 0.0
  %406 = vmatpush2.msra.mxu0 %v125
  %407 = vmatprep.subr.mxu0 0.0
  %408 = vmatpush2.msra.mxu0 %v124
  %409 = vmatprep.subr.mxu0 0.0
  %410 = vmatpush2.msra.mxu0 %v123
  %411 = vmatprep.subr.mxu0 0.0
  %412 = vmatpush2.msra.mxu0 %v122
  %413 = vmatprep.mubr.f32.mxu0 %v19
  %414 = vmatmul.mubr.f32.gmra.mxu0 %v18
  %v415 = vpop.f32.mrf.mxu0
  %v416 = vadd.f32 %v331, %v415
  %v417 = vpop.f32.mrf.mxu0
  %418 = vmatprep.mubr.f32.mxu0 %v26
  %419 = vmatmul.mubr.f32.gmra.mxu0 %v25
  %v420 = vpop.f32.mrf.mxu0
  %v421 = vadd.f32 %v336, %v420
  %v422 = vpop.f32.mrf.mxu0
  %423 = vmatprep.mubr.f32.mxu0 %v33
  %424 = vmatmul.mubr.f32.gmra.mxu0 %v32
  %v425 = vpop.f32.mrf.mxu0
  %v426 = vadd.f32 %v341, %v425
  %v427 = vpop.f32.mrf.mxu0
  %428 = vmatprep.mubr.f32.mxu0 %v40
  %429 = vmatmul.mubr.f32.gmra.mxu0 %v39
  %v430 = vpop.f32.mrf.mxu0
  %v431 = vadd.f32 %v346, %v430
  %v432 = vpop.f32.mrf.mxu0
  %433 = vdwg.mxu0
  %434 = vmatprep.subr.mxu0 0.0
  %435 = vmatpush1.msra.mxu0 0.0
  %436 = vmatprep.subr.mxu0 0.0
  %437 = vmatpush1.msra.mxu0 0.0
  %438 = vmatprep.subr.mxu0 0.0
  %439 = vmatpush1.msra.mxu0 0.0
  %440 = vmatprep.subr.mxu0 0.0
  %441 = vmatpush1.msra.mxu0 0.0
  %442 = vmatprep.subr.mxu0 0.0
  %443 = vmatpush1.msra.mxu0 0.0
  %444 = vmatprep.subr.mxu0 0.0
  %445 = vmatpush1.msra.mxu0 0.0
  %446 = vmatprep.subr.mxu0 0.0
  %447 = vmatpush1.msra.mxu0 0.0
  %448 = vmatprep.subr.mxu0 0.0
  %449 = vmatpush1.msra.mxu0 0.0
  %450 = vmatprep.subr.mxu0 0.0
  %451 = vmatpush1.msra.mxu0 0.0
  %452 = vmatprep.subr.mxu0 0.0
  %453 = vmatpush1.msra.mxu0 0.0
  %454 = vmatprep.subr.mxu0 0.0
  %455 = vmatpush1.msra.mxu0 0.0
  %456 = vmatprep.subr.mxu0 0.0
  %457 = vmatpush1.msra.mxu0 0.0
  %458 = vmatprep.subr.mxu0 0.0
  %459 = vmatpush1.msra.mxu0 %v141
  %460 = vmatprep.subr.mxu0 0.0
  %461 = vmatpush1.msra.mxu0 %v140
  %462 = vmatprep.subr.mxu0 0.0
  %463 = vmatpush1.msra.mxu0 %v139
  %464 = vmatprep.subr.mxu0 0.0
  %465 = vmatpush1.msra.mxu0 %v138
  %466 = vmatprep.subr.mxu0 0.0
  %467 = vmatpush2.msra.mxu0 0.0
  %468 = vmatprep.subr.mxu0 0.0
  %469 = vmatpush2.msra.mxu0 0.0
  %470 = vmatprep.subr.mxu0 0.0
  %471 = vmatpush2.msra.mxu0 0.0
  %472 = vmatprep.subr.mxu0 0.0
  %473 = vmatpush2.msra.mxu0 0.0
  %474 = vmatprep.subr.mxu0 0.0
  %475 = vmatpush2.msra.mxu0 0.0
  %476 = vmatprep.subr.mxu0 0.0
  %477 = vmatpush2.msra.mxu0 0.0
  %478 = vmatprep.subr.mxu0 0.0
  %479 = vmatpush2.msra.mxu0 0.0
  %480 = vmatprep.subr.mxu0 0.0
  %481 = vmatpush2.msra.mxu0 0.0
  %482 = vmatprep.subr.mxu0 0.0
  %483 = vmatpush2.msra.mxu0 0.0
  %484 = vmatprep.subr.mxu0 0.0
  %485 = vmatpush2.msra.mxu0 0.0
  %486 = vmatprep.subr.mxu0 0.0
  %487 = vmatpush2.msra.mxu0 0.0
  %488 = vmatprep.subr.mxu0 0.0
  %489 = vmatpush2.msra.mxu0 0.0
  %490 = vmatprep.subr.mxu0 0.0
  %491 = vmatpush2.msra.mxu0 0.0
  %492 = vmatprep.subr.mxu0 0.0
  %493 = vmatpush2.msra.mxu0 0.0
  %494 = vmatprep.subr.mxu0 0.0
  %495 = vmatpush2.msra.mxu0 0.0
  %496 = vmatprep.subr.mxu0 0.0
  %497 = vmatpush2.msra.mxu0 0.0
  %498 = vmatprep.mubr.f32.mxu0 0.0
  %499 = vmatmul.mubr.f32.gmra.mxu0 %v168
  %v500 = vpop.f32.mrf.mxu0
  %v501 = vadd.f32 %v416, %v500
  %v502 = vpop.f32.mrf.mxu0
  %503 = vmatprep.mubr.f32.mxu0 0.0
  %504 = vmatmul.mubr.f32.gmra.mxu0 %v171
  %v505 = vpop.f32.mrf.mxu0
  %v506 = vadd.f32 %v421, %v505
  %v507 = vpop.f32.mrf.mxu0
  %508 = vmatprep.mubr.f32.mxu0 0.0
  %509 = vmatmul.mubr.f32.gmra.mxu0 %v174
  %v510 = vpop.f32.mrf.mxu0
  %v511 = vadd.f32 %v426, %v510
  %v512 = vpop.f32.mrf.mxu0
  %513 = vmatprep.mubr.f32.mxu0 0.0
  %514 = vmatmul.mubr.f32.gmra.mxu0 %v177
  %v515 = vpop.f32.mrf.mxu0
  %v516 = vadd.f32 %v431, %v515
  %v517 = vpop.f32.mrf.mxu0
  %518 = vdwg.mxu0
  %v519 = vmax.f32 %v501, 0.0
  %v520 = vmax.f32 %v506, 0.0
  %v521 = vmax.f32 %v511, 0.0
  %v522 = vmax.f32 %v516, 0.0
  %vm523 = vcmask 64512
  %524 = vst.msk [vmem:[%s3] sm:$0xff] %vm523, %v519
  %525 = vst.msk [vmem:[%s3 + $0x8] sm:$0xff] %vm523, %v520
  %526 = vst.msk [vmem:[%s3 + $0x10] sm:$0xff] %vm523, %v521
  %527 = vst.msk [vmem:[%s3 + $0x18] sm:$0xff] %vm523, %v522
  // Predicated region
  $region14: #{critic_forward.6} parent=0 // pred_check
    _
  $region15: #{critic_forward.6} parent=0 // pred_check_branch
    %529 = sbr.rel (0) target = $region17
  $region16: #{critic_forward.6} parent=0 // pred_region
    _
  $region17: #{critic_forward.6} parent=0 // pred_fallthru
    _
  // Predicated region
  $region18: #{critic_forward.6} parent=0 // pred_check
    _
  $region19: #{critic_forward.6} parent=0 // pred_check_branch
    %531 = sbr.rel (0) target = $region21
  $region20: #{critic_forward.6} parent=0 // pred_region
    _
  $region21: #{critic_forward.6} parent=0 // pred_fallthru
    _

// kernel: critic_forward.7
$region0: #{critic_forward.7}
  #allocation0 [shape = 'u32[]', space=smem, size = 0x4, offset = 0x4, fixed_abs, tag = 'smem constant byte address 0x4 - core index']
  #allocation1 [shape = 'u32[144,128]{1,0:T(1,128)}', space=vmem, size = 0x12000, scoped, tag = 'internal scratch']
  %s0 = inlined_call_operand.vmem [shape: f32[2,132], index: 0, kind: input, shape index: {}]
  %s1 = inlined_call_operand.vmem [shape: f32[132,400], index: 1, kind: input, shape index: {}]
  %s2 = inlined_call_operand.vmem [shape: f32[1,400], index: 2, kind: input, shape index: {}]
  %s3 = inlined_call_operand.vmem [shape: f32[400,128], index: 3, kind: input, shape index: {}]
  %s4 = inlined_call_operand.vmem [shape: f32[1,128], index: 4, kind: input, shape index: {}]
  %s5 = inlined_call_operand.vmem [shape: f32[2,128], index: 5, kind: output, shape index: {}]
  %s6 = sld [smem:[#allocation0]]
  $region30: #{critic_forward.7} parent=0
    _
  %s8 = ssub.s32 1, %s6
  %s9 = scalar_select 0, %s8, %s6
  // Predicated region
  $region2: #{critic_forward.7} parent=0 // pred_check
    _
  $region3: #{critic_forward.7} parent=0 // pred_check_branch
    %11 = sbr.rel (0) target = $region5
  $region4: #{critic_forward.7} parent=0 // pred_region
    _
  $region5: #{critic_forward.7} parent=0 // pred_fallthru
    _
  // Predicated region
  $region6: #{critic_forward.7} parent=0 // pred_check
    _
  $region7: #{critic_forward.7} parent=0 // pred_check_branch
    %13 = sbr.rel (0) target = $region9
  $region8: #{critic_forward.7} parent=0 // pred_region
    _
  $region9: #{critic_forward.7} parent=0 // pred_fallthru
    _
  // Predicated region
  $region10: #{critic_forward.7} parent=0 // pred_check
    _
  $region11: #{critic_forward.7} parent=0 // pred_check_branch
    %15 = sbr.rel (0) target = $region13
  $region12: #{critic_forward.7} parent=0 // pred_region
    _
  $region13: #{critic_forward.7} parent=0 // pred_fallthru
    _
  // Predicated region
  $region14: #{critic_forward.7} parent=0 // pred_check
    _
  $region15: #{critic_forward.7} parent=0 // pred_check_branch
    %17 = sbr.rel (0) target = $region17
  $region16: #{critic_forward.7} parent=0 // pred_region
    _
  $region17: #{critic_forward.7} parent=0 // pred_fallthru
    _
  // Predicated region
  $region18: #{critic_forward.7} parent=0 // pred_check
    _
  $region19: #{critic_forward.7} parent=0 // pred_check_branch
    %19 = sbr.rel (0) target = $region21
  $region20: #{critic_forward.7} parent=0 // pred_region
    _
  $region21: #{critic_forward.7} parent=0 // pred_fallthru
    _
  %v20 = vld [vmem:[%s0] sm:$0xf]
  %v21 = vld [vmem:[%s1] sm:$0xff]
  %v22 = vld [vmem:[%s1 + $0x8] sm:$0xff]
  %v23 = vld [vmem:[%s1 + $0x10] sm:$0xff]
  %v24 = vld [vmem:[%s1 + $0x18] sm:$0xff]
  %v25 = vld [vmem:[%s1 + $0x20] sm:$0xff]
  %v26 = vld [vmem:[%s1 + $0x28] sm:$0xff]
  %v27 = vld [vmem:[%s1 + $0x30] sm:$0xff]
  %v28 = vld [vmem:[%s1 + $0x38] sm:$0xff]
  %v29 = vld [vmem:[%s1 + $0x40] sm:$0xff]
  %v30 = vld [vmem:[%s1 + $0x48] sm:$0xff]
  %v31 = vld [vmem:[%s1 + $0x50] sm:$0xff]
  %v32 = vld [vmem:[%s1 + $0x58] sm:$0xff]
  %v33 = vld [vmem:[%s1 + $0x60] sm:$0xff]
  %v34 = vld [vmem:[%s1 + $0x68] sm:$0xff]
  %v35 = vld [vmem:[%s1 + $0x70] sm:$0xff]
  %v36 = vld [vmem:[%s1 + $0x78] sm:$0xff]
  %v37 = vld [vmem:[%s1 + $0x80] sm:$0xff]
  %v38 = vld [vmem:[%s1 + $0x88] sm:$0xff]
  %v39 = vld [vmem:[%s1 + $0x90] sm:$0xff]
  %v40 = vld [vmem:[%s1 + $0x98] sm:$0xff]
  %v41 = vld [vmem:[%s1 + $0xa0] sm:$0xff]
  %v42 = vld [vmem:[%s1 + $0xa8] sm:$0xff]
  %v43 = vld [vmem:[%s1 + $0xb0] sm:$0xff]
  %v44 = vld [vmem:[%s1 + $0xb8] sm:$0xff]
  %v45 = vld [vmem:[%s1 + $0xc0] sm:$0xff]
  %v46 = vld [vmem:[%s1 + $0xc8] sm:$0xff]
  %v47 = vld [vmem:[%s1 + $0xd0] sm:$0xff]
  %v48 = vld [vmem:[%s1 + $0xd8] sm:$0xff]
  %v49 = vld [vmem:[%s1 + $0xe0] sm:$0xff]
  %v50 = vld [vmem:[%s1 + $0xe8] sm:$0xff]
  %v51 = vld [vmem:[%s1 + $0xf0] sm:$0xff]
  %v52 = vld [vmem:[%s1 + $0xf8] sm:$0xff]
  %v53 = vld [vmem:[%s1 + $0x100] sm:$0xff]
  %v54 = vld [vmem:[%s1 + $0x108] sm:$0xff]
  %v55 = vld [vmem:[%s1 + $0x110] sm:$0xff]
  %v56 = vld [vmem:[%s1 + $0x118] sm:$0xff]
  %v57 = vld [vmem:[%s1 + $0x120] sm:$0xff]
  %v58 = vld [vmem:[%s1 + $0x128] sm:$0xff]
  %v59 = vld [vmem:[%s1 + $0x130] sm:$0xff]
  %v60 = vld [vmem:[%s1 + $0x138] sm:$0xff]
  %v61 = vld [vmem:[%s1 + $0x140] sm:$0xff]
  %v62 = vld [vmem:[%s1 + $0x148] sm:$0xff]
  %v63 = vld [vmem:[%s1 + $0x150] sm:$0xff]
  %v64 = vld [vmem:[%s1 + $0x158] sm:$0xff]
  %v65 = vld [vmem:[%s1 + $0x160] sm:$0xff]
  %v66 = vld [vmem:[%s1 + $0x168] sm:$0xff]
  %v67 = vld [vmem:[%s1 + $0x170] sm:$0xff]
  %v68 = vld [vmem:[%s1 + $0x178] sm:$0xff]
  %v69 = vld [vmem:[%s1 + $0x180] sm:$0xff]
  %v70 = vld [vmem:[%s1 + $0x188] sm:$0xff]
  %v71 = vld [vmem:[%s1 + $0x190] sm:$0xff]
  %v72 = vld [vmem:[%s1 + $0x198] sm:$0xff]
  %v73 = vld [vmem:[%s1 + $0x1a0] sm:$0xff]
  %v74 = vld [vmem:[%s1 + $0x1a8] sm:$0xff]
  %v75 = vld [vmem:[%s1 + $0x1b0] sm:$0xff]
  %v76 = vld [vmem:[%s1 + $0x1b8] sm:$0xff]
  %v77 = vld [vmem:[%s1 + $0x1c0] sm:$0xff]
  %v78 = vld [vmem:[%s1 + $0x1c8] sm:$0xff]
  %v79 = vld [vmem:[%s1 + $0x1d0] sm:$0xff]
  %v80 = vld [vmem:[%s1 + $0x1d8] sm:$0xff]
  %v81 = vld [vmem:[%s1 + $0x1e0] sm:$0xff]
  %v82 = vld [vmem:[%s1 + $0x1e8] sm:$0xff]
  %v83 = vld [vmem:[%s1 + $0x1f0] sm:$0xff]
  %v84 = vld [vmem:[%s1 + $0x1f8] sm:$0xff]
  %v85 = vld [vmem:[%s1 + $0x200] sm:$0xf]
  %v86 = vld [vmem:[%s1 + $0x208] sm:$0xf]
  %v87 = vld [vmem:[%s1 + $0x210] sm:$0xf]
  %v88 = vld [vmem:[%s1 + $0x218] sm:$0xf]
  %v89 = vld [vmem:[%s2] sm:$0xf]
  %v91 = vlaneseq
  %v92 = vshrl.u32 %v91, 7
  %v93 = vsub.s32 0, %v92
  %v94 = vrot.slane %v89, %v93
  %v95 = vlaneseq
  %v96 = vshrl.u32 %v95, 7
  %v97 = vsub.s32 1, %v96
  %v98 = vrot.slane %v89, %v97
  %v99 = vlaneseq
  %v100 = vshrl.u32 %v99, 7
  %v101 = vsub.s32 2, %v100
  %v102 = vrot.slane %v89, %v101
  %v103 = vlaneseq
  %v104 = vshrl.u32 %v103, 7
  %v105 = vsub.s32 3, %v104
  %v106 = vrot.slane %v89, %v105
  %v113 = vunpack.c.l.s4 1983009808
  %v114 = vunpack.c.0.s8 %v113
  %v115 = vlaneseq
  %v116 = vshrl.u32 %v115, 7
  %v117 = vsub.s32 %v114, %v116
  %v118 = vrot.slane %v20, %v117
  %v119 = vcombine.high %v118, %v118
  %vm121 = vcmask 31744
  %v122 = vsel %vm121, %v119, 0
  %vm124 = vcmask 1043456
  %v126 = vsel %vm124, %v85, 0
  %v129 = vsel %vm124, %v86, 0
  %v132 = vsel %vm124, %v87, 0
  %v135 = vsel %vm124, %v88, 0
  %137 = vmatprep.subr.mxu0 %v82
  %138 = vmatpush1.msra.mxu0 %v81
  %139 = vmatprep.subr.mxu0 %v78
  %140 = vmatpush1.msra.mxu0 %v77
  %141 = vmatprep.subr.mxu0 %v74
  %142 = vmatpush1.msra.mxu0 %v73
  %143 = vmatprep.subr.mxu0 %v70
  %144 = vmatpush1.msra.mxu0 %v69
  %145 = vmatprep.subr.mxu0 %v66
  %146 = vmatpush1.msra.mxu0 %v65
  %147 = vmatprep.subr.mxu0 %v62
  %148 = vmatpush1.msra.mxu0 %v61
  %149 = vmatprep.subr.mxu0 %v58
  %150 = vmatpush1.msra.mxu0 %v57
  %151 = vmatprep.subr.mxu0 %v54
  %152 = vmatpush1.msra.mxu0 %v53
  %153 = vmatprep.subr.mxu0 %v50
  %154 = vmatpush1.msra.mxu0 %v49
  %155 = vmatprep.subr.mxu0 %v46
  %156 = vmatpush1.msra.mxu0 %v45
  %157 = vmatprep.subr.mxu0 %v42
  %158 = vmatpush1.msra.mxu0 %v41
  %159 = vmatprep.subr.mxu0 %v38
  %160 = vmatpush1.msra.mxu0 %v37
  %161 = vmatprep.subr.mxu0 %v34
  %162 = vmatpush1.msra.mxu0 %v33
  %163 = vmatprep.subr.mxu0 %v30
  %164 = vmatpush1.msra.mxu0 %v29
  %165 = vmatprep.subr.mxu0 %v26
  %166 = vmatpush1.msra.mxu0 %v25
  %167 = vmatprep.subr.mxu0 %v22
  %168 = vmatpush1.msra.mxu0 %v21
  %169 = vmatprep.subr.mxu0 0.0
  %170 = vmatpush2.msra.mxu0 0.0
  %171 = vmatprep.subr.mxu0 0.0
  %172 = vmatpush2.msra.mxu0 0.0
  %173 = vmatprep.subr.mxu0 0.0
  %174 = vmatpush2.msra.mxu0 0.0
  %175 = vmatprep.subr.mxu0 0.0
  %176 = vmatpush2.msra.mxu0 0.0
  %177 = vmatprep.subr.mxu0 0.0
  %178 = vmatpush2.msra.mxu0 0.0
  %179 = vmatprep.subr.mxu0 0.0
  %180 = vmatpush2.msra.mxu0 0.0
  %181 = vmatprep.subr.mxu0 0.0
  %182 = vmatpush2.msra.mxu0 0.0
  %183 = vmatprep.subr.mxu0 0.0
  %184 = vmatpush2.msra.mxu0 0.0
  %185 = vmatprep.subr.mxu0 0.0
  %186 = vmatpush2.msra.mxu0 0.0
  %187 = vmatprep.subr.mxu0 0.0
  %188 = vmatpush2.msra.mxu0 0.0
  %189 = vmatprep.subr.mxu0 0.0
  %190 = vmatpush2.msra.mxu0 0.0
  %191 = vmatprep.subr.mxu0 0.0
  %192 = vmatpush2.msra.mxu0 0.0
  %193 = vmatprep.subr.mxu0 0.0
  %194 = vmatpush2.msra.mxu0 0.0
  %195 = vmatprep.subr.mxu0 0.0
  %196 = vmatpush2.msra.mxu0 0.0
  %197 = vmatprep.subr.mxu0 0.0
  %198 = vmatpush2.msra.mxu0 0.0
  %199 = vmatprep.subr.mxu0 %v129
  %200 = vmatpush2.msra.mxu0 %v126
  %201 = vmatprep.mubr.f32.mxu0 %v122
  %202 = vmatmul.mubr.f32.gmra.mxu0 %v118
  %v203 = vpop.f32.mrf.mxu0
  %v204 = vadd.f32 %v94, %v203
  %v205 = vpop.f32.mrf.mxu0
  %v206 = vadd.f32 %v98, %v205
  %207 = vdwg.mxu0
  %208 = vmatprep.subr.mxu0 %v84
  %209 = vmatpush1.msra.mxu0 %v83
  %210 = vmatprep.subr.mxu0 %v80
  %211 = vmatpush1.msra.mxu0 %v79
  %212 = vmatprep.subr.mxu0 %v76
  %213 = vmatpush1.msra.mxu0 %v75
  %214 = vmatprep.subr.mxu0 %v72
  %215 = vmatpush1.msra.mxu0 %v71
  %216 = vmatprep.subr.mxu0 %v68
  %217 = vmatpush1.msra.mxu0 %v67
  %218 = vmatprep.subr.mxu0 %v64
  %219 = vmatpush1.msra.mxu0 %v63
  %220 = vmatprep.subr.mxu0 %v60
  %221 = vmatpush1.msra.mxu0 %v59
  %222 = vmatprep.subr.mxu0 %v56
  %223 = vmatpush1.msra.mxu0 %v55
  %224 = vmatprep.subr.mxu0 %v52
  %225 = vmatpush1.msra.mxu0 %v51
  %226 = vmatprep.subr.mxu0 %v48
  %227 = vmatpush1.msra.mxu0 %v47
  %228 = vmatprep.subr.mxu0 %v44
  %229 = vmatpush1.msra.mxu0 %v43
  %230 = vmatprep.subr.mxu0 %v40
  %231 = vmatpush1.msra.mxu0 %v39
  %232 = vmatprep.subr.mxu0 %v36
  %233 = vmatpush1.msra.mxu0 %v35
  %234 = vmatprep.subr.mxu0 %v32
  %235 = vmatpush1.msra.mxu0 %v31
  %236 = vmatprep.subr.mxu0 %v28
  %237 = vmatpush1.msra.mxu0 %v27
  %238 = vmatprep.subr.mxu0 %v24
  %239 = vmatpush1.msra.mxu0 %v23
  %240 = vmatprep.subr.mxu0 0.0
  %241 = vmatpush2.msra.mxu0 0.0
  %242 = vmatprep.subr.mxu0 0.0
  %243 = vmatpush2.msra.mxu0 0.0
  %244 = vmatprep.subr.mxu0 0.0
  %245 = vmatpush2.msra.mxu0 0.0
  %246 = vmatprep.subr.mxu0 0.0
  %247 = vmatpush2.msra.mxu0 0.0
  %248 = vmatprep.subr.mxu0 0.0
  %249 = vmatpush2.msra.mxu0 0.0
  %250 = vmatprep.subr.mxu0 0.0
  %251 = vmatpush2.msra.mxu0 0.0
  %252 = vmatprep.subr.mxu0 0.0
  %253 = vmatpush2.msra.mxu0 0.0
  %254 = vmatprep.subr.mxu0 0.0
  %255 = vmatpush2.msra.mxu0 0.0
  %256 = vmatprep.subr.mxu0 0.0
  %257 = vmatpush2.msra.mxu0 0.0
  %258 = vmatprep.subr.mxu0 0.0
  %259 = vmatpush2.msra.mxu0 0.0
  %260 = vmatprep.subr.mxu0 0.0
  %261 = vmatpush2.msra.mxu0 0.0
  %262 = vmatprep.subr.mxu0 0.0
  %263 = vmatpush2.msra.mxu0 0.0
  %264 = vmatprep.subr.mxu0 0.0
  %265 = vmatpush2.msra.mxu0 0.0
  %266 = vmatprep.subr.mxu0 0.0
  %267 = vmatpush2.msra.mxu0 0.0
  %268 = vmatprep.subr.mxu0 0.0
  %269 = vmatpush2.msra.mxu0 0.0
  %270 = vmatprep.subr.mxu0 %v135
  %271 = vmatpush2.msra.mxu0 %v132
  %272 = vmatprep.mubr.f32.mxu0 %v122
  %273 = vmatmul.mubr.f32.gmra.mxu0 %v118
  %v274 = vpop.f32.mrf.mxu0
  %v275 = vadd.f32 %v102, %v274
  %v276 = vpop.f32.mrf.mxu0
  %v277 = vadd.f32 %v106, %v276
  %278 = vdwg.mxu0
  %v279 = vmax.f32 %v204, 0.0
  %v280 = vmax.f32 %v206, 0.0
  %v281 = vmax.f32 %v275, 0.0
  %v282 = vmax.f32 %v277, 0.0
  %v283 = vld [vmem:[%s3] sm:$0xff]
  %v284 = vld [vmem:[%s3 + $0x8] sm:$0xff]
  %v285 = vld [vmem:[%s3 + $0x10] sm:$0xff]
  %v286 = vld [vmem:[%s3 + $0x18] sm:$0xff]
  %v287 = vld [vmem:[%s3 + $0x20] sm:$0xff]
  %v288 = vld [vmem:[%s3 + $0x28] sm:$0xff]
  %v289 = vld [vmem:[%s3 + $0x30] sm:$0xff]
  %v290 = vld [vmem:[%s3 + $0x38] sm:$0xff]
  %v291 = vld [vmem:[%s3 + $0x40] sm:$0xff]
  %v292 = vld [vmem:[%s3 + $0x48] sm:$0xff]
  %v293 = vld [vmem:[%s3 + $0x50] sm:$0xff]
  %v294 = vld [vmem:[%s3 + $0x58] sm:$0xff]
  %v295 = vld [vmem:[%s3 + $0x60] sm:$0xff]
  %v296 = vld [vmem:[%s3 + $0x68] sm:$0xff]
  %v297 = vld [vmem:[%s3 + $0x70] sm:$0xff]
  %v298 = vld [vmem:[%s3 + $0x78] sm:$0xff]
  %v299 = vld [vmem:[%s3 + $0x80] sm:$0xff]
  %v300 = vld [vmem:[%s3 + $0x88] sm:$0xff]
  %v301 = vld [vmem:[%s3 + $0x90] sm:$0xff]
  %v302 = vld [vmem:[%s3 + $0x98] sm:$0xff]
  %v303 = vld [vmem:[%s3 + $0xa0] sm:$0xff]
  %v304 = vld [vmem:[%s3 + $0xa8] sm:$0xff]
  %v305 = vld [vmem:[%s3 + $0xb0] sm:$0xff]
  %v306 = vld [vmem:[%s3 + $0xb8] sm:$0xff]
  %v307 = vld [vmem:[%s3 + $0xc0] sm:$0xff]
  %v308 = vld [vmem:[%s3 + $0xc8] sm:$0xff]
  %v309 = vld [vmem:[%s3 + $0xd0] sm:$0xff]
  %v310 = vld [vmem:[%s3 + $0xd8] sm:$0xff]
  %v311 = vld [vmem:[%s3 + $0xe0] sm:$0xff]
  %v312 = vld [vmem:[%s3 + $0xe8] sm:$0xff]
  %v313 = vld [vmem:[%s3 + $0xf0] sm:$0xff]
  %v314 = vld [vmem:[%s3 + $0xf8] sm:$0xff]
  %v315 = vld [vmem:[%s3 + $0x100] sm:$0xff]
  %v316 = vld [vmem:[%s3 + $0x108] sm:$0xff]
  %v317 = vld [vmem:[%s3 + $0x110] sm:$0xff]
  %v318 = vld [vmem:[%s3 + $0x118] sm:$0xff]
  %v319 = vld [vmem:[%s3 + $0x120] sm:$0xff]
  %v320 = vld [vmem:[%s3 + $0x128] sm:$0xff]
  %v321 = vld [vmem:[%s3 + $0x130] sm:$0xff]
  %v322 = vld [vmem:[%s3 + $0x138] sm:$0xff]
  %v323 = vld [vmem:[%s3 + $0x140] sm:$0xff]
  %v324 = vld [vmem:[%s3 + $0x148] sm:$0xff]
  %v325 = vld [vmem:[%s3 + $0x150] sm:$0xff]
  %v326 = vld [vmem:[%s3 + $0x158] sm:$0xff]
  %v327 = vld [vmem:[%s3 + $0x160] sm:$0xff]
  %v328 = vld [vmem:[%s3 + $0x168] sm:$0xff]
  %v329 = vld [vmem:[%s3 + $0x170] sm:$0xff]
  %v330 = vld [vmem:[%s3 + $0x178] sm:$0xff]
  %v331 = vld [vmem:[%s3 + $0x180] sm:$0xff]
  %v332 = vld [vmem:[%s3 + $0x188] sm:$0xff]
  %v333 = vld [vmem:[%s4] sm:$0x1]
  %v335 = vlaneseq
  %v336 = vshrl.u32 %v335, 7
  %v337 = vsub.s32 0, %v336
  %v338 = vrot.slane %v333, %v337
  %vm340 = vcmask 130048
  %v342 = vsel %vm340, %v282, 0
  %344 = vmatprep.subr.mxu0 0.0
  %345 = vmatpush1.msra.mxu0 %v298
  %346 = vmatprep.subr.mxu0 0.0
  %347 = vmatpush1.msra.mxu0 %v297
  %348 = vmatprep.subr.mxu0 0.0
  %349 = vmatpush1.msra.mxu0 %v296
  %350 = vmatprep.subr.mxu0 0.0
  %351 = vmatpush1.msra.mxu0 %v295
  %352 = vmatprep.subr.mxu0 0.0
  %353 = vmatpush1.msra.mxu0 %v294
  %354 = vmatprep.subr.mxu0 0.0
  %355 = vmatpush1.msra.mxu0 %v293
  %356 = vmatprep.subr.mxu0 0.0
  %357 = vmatpush1.msra.mxu0 %v292
  %358 = vmatprep.subr.mxu0 0.0
  %359 = vmatpush1.msra.mxu0 %v291
  %360 = vmatprep.subr.mxu0 0.0
  %361 = vmatpush1.msra.mxu0 %v290
  %362 = vmatprep.subr.mxu0 0.0
  %363 = vmatpush1.msra.mxu0 %v289
  %364 = vmatprep.subr.mxu0 0.0
  %365 = vmatpush1.msra.mxu0 %v288
  %366 = vmatprep.subr.mxu0 0.0
  %367 = vmatpush1.msra.mxu0 %v287
  %368 = vmatprep.subr.mxu0 0.0
  %369 = vmatpush1.msra.mxu0 %v286
  %370 = vmatprep.subr.mxu0 0.0
  %371 = vmatpush1.msra.mxu0 %v285
  %372 = vmatprep.subr.mxu0 0.0
  %373 = vmatpush1.msra.mxu0 %v284
  %374 = vmatprep.subr.mxu0 0.0
  %375 = vmatpush1.msra.mxu0 %v283
  %376 = vmatprep.subr.mxu0 0.0
  %377 = vmatpush2.msra.mxu0 %v314
  %378 = vmatprep.subr.mxu0 0.0
  %379 = vmatpush2.msra.mxu0 %v313
  %380 = vmatprep.subr.mxu0 0.0
  %381 = vmatpush2.msra.mxu0 %v312
  %382 = vmatprep.subr.mxu0 0.0
  %383 = vmatpush2.msra.mxu0 %v311
  %384 = vmatprep.subr.mxu0 0.0
  %385 = vmatpush2.msra.mxu0 %v310
  %386 = vmatprep.subr.mxu0 0.0
  %387 = vmatpush2.msra.mxu0 %v309
  %388 = vmatprep.subr.mxu0 0.0
  %389 = vmatpush2.msra.mxu0 %v308
  %390 = vmatprep.subr.mxu0 0.0
  %391 = vmatpush2.msra.mxu0 %v307
  %392 = vmatprep.subr.mxu0 0.0
  %393 = vmatpush2.msra.mxu0 %v306
  %394 = vmatprep.subr.mxu0 0.0
  %395 = vmatpush2.msra.mxu0 %v305
  %396 = vmatprep.subr.mxu0 0.0
  %397 = vmatpush2.msra.mxu0 %v304
  %398 = vmatprep.subr.mxu0 0.0
  %399 = vmatpush2.msra.mxu0 %v303
  %400 = vmatprep.subr.mxu0 0.0
  %401 = vmatpush2.msra.mxu0 %v302
  %402 = vmatprep.subr.mxu0 0.0
  %403 = vmatpush2.msra.mxu0 %v301
  %404 = vmatprep.subr.mxu0 0.0
  %405 = vmatpush2.msra.mxu0 %v300
  %406 = vmatprep.subr.mxu0 0.0
  %407 = vmatpush2.msra.mxu0 %v299
  %408 = vmatprep.mubr.f32.mxu0 %v280
  %409 = vmatmul.mubr.f32.gmra.mxu0 %v279
  %v410 = vpop.f32.mrf.mxu0
  %v411 = vadd.f32 %v338, %v410
  %v412 = vpop.f32.mrf.mxu0
  %413 = vdwg.mxu0
  %414 = vmatprep.subr.mxu0 0.0
  %415 = vmatpush1.msra.mxu0 %v330
  %416 = vmatprep.subr.mxu0 0.0
  %417 = vmatpush1.msra.mxu0 %v329
  %418 = vmatprep.subr.mxu0 0.0
  %419 = vmatpush1.msra.mxu0 %v328
  %420 = vmatprep.subr.mxu0 0.0
  %421 = vmatpush1.msra.mxu0 %v327
  %422 = vmatprep.subr.mxu0 0.0
  %423 = vmatpush1.msra.mxu0 %v326
  %424 = vmatprep.subr.mxu0 0.0
  %425 = vmatpush1.msra.mxu0 %v325
  %426 = vmatprep.subr.mxu0 0.0
  %427 = vmatpush1.msra.mxu0 %v324
  %428 = vmatprep.subr.mxu0 0.0
  %429 = vmatpush1.msra.mxu0 %v323
  %430 = vmatprep.subr.mxu0 0.0
  %431 = vmatpush1.msra.mxu0 %v322
  %432 = vmatprep.subr.mxu0 0.0
  %433 = vmatpush1.msra.mxu0 %v321
  %434 = vmatprep.subr.mxu0 0.0
  %435 = vmatpush1.msra.mxu0 %v320
  %436 = vmatprep.subr.mxu0 0.0
  %437 = vmatpush1.msra.mxu0 %v319
  %438 = vmatprep.subr.mxu0 0.0
  %439 = vmatpush1.msra.mxu0 %v318
  %440 = vmatprep.subr.mxu0 0.0
  %441 = vmatpush1.msra.mxu0 %v317
  %442 = vmatprep.subr.mxu0 0.0
  %443 = vmatpush1.msra.mxu0 %v316
  %444 = vmatprep.subr.mxu0 0.0
  %445 = vmatpush1.msra.mxu0 %v315
  %446 = vmatprep.subr.mxu0 0.0
  %447 = vmatpush2.msra.mxu0 0.0
  %448 = vmatprep.subr.mxu0 0.0
  %449 = vmatpush2.msra.mxu0 0.0
  %450 = vmatprep.subr.mxu0 0.0
  %451 = vmatpush2.msra.mxu0 0.0
  %452 = vmatprep.subr.mxu0 0.0
  %453 = vmatpush2.msra.mxu0 0.0
  %454 = vmatprep.subr.mxu0 0.0
  %455 = vmatpush2.msra.mxu0 0.0
  %456 = vmatprep.subr.mxu0 0.0
  %457 = vmatpush2.msra.mxu0 0.0
  %458 = vmatprep.subr.mxu0 0.0
  %459 = vmatpush2.msra.mxu0 0.0
  %460 = vmatprep.subr.mxu0 0.0
  %461 = vmatpush2.msra.mxu0 0.0
  %462 = vmatprep.subr.mxu0 0.0
  %463 = vmatpush2.msra.mxu0 0.0
  %464 = vmatprep.subr.mxu0 0.0
  %465 = vmatpush2.msra.mxu0 0.0
  %466 = vmatprep.subr.mxu0 0.0
  %467 = vmatpush2.msra.mxu0 0.0
  %468 = vmatprep.subr.mxu0 0.0
  %469 = vmatpush2.msra.mxu0 0.0
  %470 = vmatprep.subr.mxu0 0.0
  %471 = vmatpush2.msra.mxu0 0.0
  %472 = vmatprep.subr.mxu0 0.0
  %473 = vmatpush2.msra.mxu0 0.0
  %474 = vmatprep.subr.mxu0 0.0
  %475 = vmatpush2.msra.mxu0 %v332
  %476 = vmatprep.subr.mxu0 0.0
  %477 = vmatpush2.msra.mxu0 %v331
  %478 = vmatprep.mubr.f32.mxu0 %v342
  %479 = vmatmul.mubr.f32.gmra.mxu0 %v281
  %v480 = vpop.f32.mrf.mxu0
  %v481 = vadd.f32 %v411, %v480
  %v482 = vpop.f32.mrf.mxu0
  %483 = vdwg.mxu0
  %484 = vst [vmem:[%s5] sm:$0x3] %v481
  // Predicated region
  $region22: #{critic_forward.7} parent=0 // pred_check
    _
  $region23: #{critic_forward.7} parent=0 // pred_check_branch
    %486 = sbr.rel (0) target = $region25
  $region24: #{critic_forward.7} parent=0 // pred_region
    _
  $region25: #{critic_forward.7} parent=0 // pred_fallthru
    _
  // Predicated region
  $region26: #{critic_forward.7} parent=0 // pred_check
    _
  $region27: #{critic_forward.7} parent=0 // pred_check_branch
    %488 = sbr.rel (0) target = $region29
  $region28: #{critic_forward.7} parent=0 // pred_region
    _
  $region29: #{critic_forward.7} parent=0 // pred_fallthru
    _

</llo_original>
